<compile_context>
chip_gen: v5e
topology: v5e:2x2
jax: 0.10.0
libtpu: 0.0.40
codegen_flags: <defaults>
</compile_context>

<pallas_src>
import jax
import jax.numpy as jnp
from jax.experimental import pallas as pl
from jax.experimental.pallas import tpu as pltpu

# ---- hyperparameters implied by the module's globals ----
N_EMBED = 32          # n_embed
NUM_HEADS = 4
HEAD_SIZE = N_EMBED // NUM_HEADS   # 8
BLOCK_SIZE = 8        # block_size (== sequence length T used here)
LAMB = 0.5            # self.lamb initial value (mix is an exact identity)
BATCH = 2

_NEG_INF = -1e30      # finite large-negative mask (safer than -inf, same result)


def _mha_kernel(x_ref, wqkv_ref, wout_ref, bout_ref, mask_ref, o_ref):
    B, T, H, hs, C = BATCH, BLOCK_SIZE, NUM_HEADS, HEAD_SIZE, N_EMBED

    x = x_ref[...]                                               # (B*T, C)

    # fused q/k/v projection: one 16x32x96 matmul
    qkv = jnp.dot(x, wqkv_ref[...], preferred_element_type=jnp.float32)  # (B*T, 3C)
    q = qkv[:, :C]
    k = qkv[:, C:2 * C]
    v = qkv[:, 2 * C:]
    # lamb mix with v1 = v is an exact identity -> omitted.

    def to_heads(a):
        # (B*T, C) -> (H*B, T, hs), batch index g = h*B + b
        return jnp.transpose(a.reshape(B * T, H, hs), (1, 0, 2)).reshape(H * B, T, hs)

    qh = to_heads(q)
    kh = to_heads(k)
    vh = to_heads(v)

    # attention scores for all B*H heads in one batched contraction
    scale = float(hs) ** -0.5
    s = jnp.einsum('gtd,gud->gtu', qh, kh,
                   preferred_element_type=jnp.float32) * scale    # (H*B, T, T)
    s = s + mask_ref[...][None, :, :]                             # additive causal mask

    # numerically stable softmax over last axis
    s = s - jnp.max(s, axis=-1, keepdims=True)
    e = jnp.exp(s)
    p = e / jnp.sum(e, axis=-1, keepdims=True)
    # dropout on attention weights: identity in eval mode

    out = jnp.einsum('gtu,gud->gtd', p, vh,
                     preferred_element_type=jnp.float32)          # (H*B, T, hs)

    # (H*B, T, hs) -> (B*T, C) with head-major feature ordering (concat of heads)
    out_cat = jnp.transpose(out.reshape(H, B * T, hs), (1, 0, 2)).reshape(B * T, C)

    # folded (per-head proj + outer proj): single matmul + bias
    y = jnp.dot(out_cat, wout_ref[...],
                preferred_element_type=jnp.float32) + bout_ref[...]
    # outer dropout: identity in eval mode

    o_ref[...] = y.astype(o_ref.dtype)


def multi_head_attention(x, wq, wk, wv, pw, pb, fw, fb):
    """x: (B, T, C); weights in PyTorch nn.Linear layout, per-head stacked on H."""
    B, T, C = x.shape
    H, hs, _ = wq.shape
    assert T == BLOCK_SIZE and C == N_EMBED and H == NUM_HEADS and hs == HEAD_SIZE

    # ---- host-side weight folding (done once; tiny) ----
    # fused QKV weight: qkv = x2 @ w_qkv_t, columns [q | k | v], heads head-major
    w_qkv_t = jnp.concatenate(
        [wq.reshape(C, C), wk.reshape(C, C), wv.reshape(C, C)], axis=0).T   # (C, 3C)

    # fold per-head proj (block-diag of pw) and outer proj fw into one weight/bias
    blk = jnp.zeros((C, C), dtype=pw.dtype)
    for h in range(H):
        blk = blk.at[h * hs:(h + 1) * hs, h * hs:(h + 1) * hs].set(pw[h])
    w_out_t = blk.T @ fw.T                                                   # (C, C)
    b_out = pb.reshape(1, C) @ fw.T + fb.reshape(1, C)                       # (1, C)

    # trace-time additive causal mask
    mask = jnp.where(jnp.tril(jnp.ones((T, T), dtype=bool)),
                     0.0, _NEG_INF).astype(jnp.float32)                      # (T, T)

    x2 = x.reshape(B * T, C)

    y = pl.pallas_call(
        _mha_kernel,
        out_shape=jax.ShapeDtypeStruct((B * T, C), x.dtype),
        grid_spec=pltpu.PrefetchScalarGridSpec(
            num_scalar_prefetch=0,
            grid=(1,),                                   # single invocation
            in_specs=[
                pl.BlockSpec((B * T, C), lambda i: (0, 0)),     # x (B folded into rows)
                pl.BlockSpec((C, 3 * C), lambda i: (0, 0)),     # fused QKV weight
                pl.BlockSpec((C, C), lambda i: (0, 0)),         # folded output weight
                pl.BlockSpec((1, C), lambda i: (0, 0)),         # folded output bias
                pl.BlockSpec((T, T), lambda i: (0, 0)),         # additive causal mask
            ],
            out_specs=pl.BlockSpec((B * T, C), lambda i: (0, 0)),
        ),
        compiler_params=pltpu.CompilerParams(
            dimension_semantics=("arbitrary",)),
    )(x2, w_qkv_t, w_out_t, b_out, mask)

    return y.reshape(B, T, C)


def _reference(x, wq, wk, wv, pw, pb, fw, fb):
    """Pure-JAX reference of the intended PyTorch forward (eval mode)."""
    B, T, C = x.shape
    q = jnp.einsum('btc,hsc->bhts', x, wq)
    k = jnp.einsum('btc,hsc->bhts', x, wk)
    v = jnp.einsum('btc,hsc->bhts', x, wv)
    v = (1.0 - LAMB) * v + LAMB * v
    w = jnp.einsum('bhts,bhus->bhtu', q, k) * (HEAD_SIZE ** -0.5)
    mask = jnp.tril(jnp.ones((T, T), bool))
    w = jnp.where(mask[None, None], w, -jnp.inf)
    p = jax.nn.softmax(w, axis=-1)
    out = jnp.einsum('bhtu,bhus->bhts', p, v)
    head_out = jnp.einsum('bhts,hps->bhtp', out, pw) + pb[None, :, None, :]
    cat = jnp.transpose(head_out, (0, 2, 1, 3)).reshape(B, T, C)
    return jnp.einsum('btc,dc->btd', cat, fw) + fb[0]


if __name__ == "__main__":
    key = jax.random.PRNGKey(0)
    ks = jax.random.split(key, 8)

    x = jax.random.normal(ks[0], (BATCH, BLOCK_SIZE, N_EMBED), jnp.float32)

    # Deterministic parameter init (synthetic; PyTorch Linear layout (out, in)).
    wq = 0.02 * jax.random.normal(ks[1], (NUM_HEADS, HEAD_SIZE, N_EMBED), jnp.float32)
    wk = 0.02 * jax.random.normal(ks[2], (NUM_HEADS, HEAD_SIZE, N_EMBED), jnp.float32)
    wv = 0.02 * jax.random.normal(ks[3], (NUM_HEADS, HEAD_SIZE, N_EMBED), jnp.float32)
    pw = 0.02 * jax.random.normal(ks[4], (NUM_HEADS, HEAD_SIZE, HEAD_SIZE), jnp.float32)
    pb = 0.02 * jax.random.normal(ks[5], (NUM_HEADS, HEAD_SIZE), jnp.float32)
    fw = 0.02 * jax.random.normal(ks[6], (N_EMBED, N_EMBED), jnp.float32)
    fb = 0.02 * jax.random.normal(ks[7], (1, N_EMBED), jnp.float32)

    out = multi_head_attention(x, wq, wk, wv, pw, pb, fw, fb)
    out = jax.block_until_ready(out)

    ref = _reference(x, wq, wk, wv, pw, pb, fw, fb)
    assert out.shape == (BATCH, BLOCK_SIZE, N_EMBED)
    assert jnp.allclose(out, ref, atol=1e-5, rtol=1e-5), "mismatch vs reference"

    print("KERNEL_OK")
</pallas_src>

<mosaic_0001>
module attributes {stable_mosaic.version = 11 : i64} {
  func.func @_mha_kernel(%arg0: i32, %arg1: memref<16x32xf32, #tpu.memory_space<vmem>>, %arg2: memref<32x96xf32, #tpu.memory_space<vmem>>, %arg3: memref<32x32xf32, #tpu.memory_space<vmem>>, %arg4: memref<1x32xf32, #tpu.memory_space<vmem>>, %arg5: memref<8x8xf32, #tpu.memory_space<vmem>>, %arg6: memref<16x32xf32, #tpu.memory_space<vmem>>) attributes {dimension_semantics = [#tpu.dimension_semantics<arbitrary>], iteration_bounds = array<i64: 1>, scalar_prefetch = 0 : i64, scratch_operands = 0 : i64, tpu.core_type = #tpu.core_type<tc>, window_params = [{pipeline_mode = #tpu.pipeline_mode<synchronous>, transform_indices = @transform_0, window_bounds = array<i64: 16, 32>}, {pipeline_mode = #tpu.pipeline_mode<synchronous>, transform_indices = @transform_1, window_bounds = array<i64: 32, 96>}, {pipeline_mode = #tpu.pipeline_mode<synchronous>, transform_indices = @transform_2, window_bounds = array<i64: 32, 32>}, {pipeline_mode = #tpu.pipeline_mode<synchronous>, transform_indices = @transform_3, window_bounds = array<i64: 1, 32>}, {pipeline_mode = #tpu.pipeline_mode<synchronous>, transform_indices = @transform_4, window_bounds = array<i64: 8, 8>}, {pipeline_mode = #tpu.pipeline_mode<synchronous>, transform_indices = @transform_5, window_bounds = array<i64: 16, 32>}]} {
    %c0 = arith.constant 0 : index
    %c0_0 = arith.constant 0 : index
    %0 = vector.load %arg1[%c0, %c0_0] : memref<16x32xf32, #tpu.memory_space<vmem>>, vector<16x32xf32>
    %c0_1 = arith.constant 0 : index
    %c0_2 = arith.constant 0 : index
    %1 = vector.load %arg2[%c0_1, %c0_2] : memref<32x96xf32, #tpu.memory_space<vmem>>, vector<32x96xf32>
    %cst = arith.constant dense<0.000000e+00> : vector<16x96xf32>
    %2 = tpu.matmul %0, %1, %cst {dimension_numbers = #tpu.dot_dimension_numbers<[1], [0], [0], [1], [0, 0, 1, 1], [], []>} : vector<16x32xf32>, vector<32x96xf32>, vector<16x96xf32> -> vector<16x96xf32>
    %3 = vector.extract_strided_slice %2 {offsets = [0, 0], sizes = [16, 32], strides = [1, 1]} : vector<16x96xf32> to vector<16x32xf32>
    %4 = vector.extract_strided_slice %2 {offsets = [0, 32], sizes = [16, 32], strides = [1, 1]} : vector<16x96xf32> to vector<16x32xf32>
    %5 = vector.extract_strided_slice %2 {offsets = [0, 64], sizes = [16, 32], strides = [1, 1]} : vector<16x96xf32> to vector<16x32xf32>
    %6 = vector.shape_cast %3 : vector<16x32xf32> to vector<16x4x8xf32>
    %7 = tpu.transpose %6, [1, 0, 2] : vector<16x4x8xf32> -> vector<4x16x8xf32>
    %8 = vector.shape_cast %7 : vector<4x16x8xf32> to vector<8x8x8xf32>
    %9 = vector.shape_cast %4 : vector<16x32xf32> to vector<16x4x8xf32>
    %10 = tpu.transpose %9, [1, 0, 2] : vector<16x4x8xf32> -> vector<4x16x8xf32>
    %11 = vector.shape_cast %10 : vector<4x16x8xf32> to vector<8x8x8xf32>
    %12 = vector.shape_cast %5 : vector<16x32xf32> to vector<16x4x8xf32>
    %13 = tpu.transpose %12, [1, 0, 2] : vector<16x4x8xf32> -> vector<4x16x8xf32>
    %14 = vector.shape_cast %13 : vector<4x16x8xf32> to vector<8x8x8xf32>
    "tpu.trace_start"() <{level = 10 : i32, message = "gtd,gud->gtu"}> : () -> ()
    %cst_3 = arith.constant dense<0.000000e+00> : vector<8x8x8xf32>
    %15 = tpu.matmul %8, %11, %cst_3 {dimension_numbers = #tpu.dot_dimension_numbers<[2], [2], [1], [1], [0, 0, 0, 1, 1, 1], [0], [0]>} : vector<8x8x8xf32>, vector<8x8x8xf32>, vector<8x8x8xf32> -> vector<8x8x8xf32>
    "tpu.trace_stop"() : () -> ()
    %cst_4 = arith.constant 0.353553385 : f32
    %16 = vector.broadcast %cst_4 : f32 to vector<8x8x8xf32>
    %17 = arith.mulf %15, %16 : vector<8x8x8xf32>
    %c0_5 = arith.constant 0 : index
    %c0_6 = arith.constant 0 : index
    %18 = vector.load %arg5[%c0_5, %c0_6] : memref<8x8xf32, #tpu.memory_space<vmem>>, vector<8x8xf32>
    %19 = vector.shape_cast %18 : vector<8x8xf32> to vector<1x8x8xf32>
    %20 = vector.broadcast %19 : vector<1x8x8xf32> to vector<8x8x8xf32>
    %21 = arith.addf %17, %20 : vector<8x8x8xf32>
    %cst_7 = arith.constant dense<0xFF800000> : vector<8x8xf32>
    %22 = vector.multi_reduction <maximumf>, %21, %cst_7 [2] : vector<8x8x8xf32> to vector<8x8xf32>
    %23 = vector.shape_cast %22 : vector<8x8xf32> to vector<8x8x1xf32>
    %24 = vector.broadcast %23 : vector<8x8x1xf32> to vector<8x8x8xf32>
    %25 = arith.subf %21, %24 : vector<8x8x8xf32>
    %26 = math.exp %25 : vector<8x8x8xf32>
    %cst_8 = arith.constant dense<0.000000e+00> : vector<8x8xf32>
    %27 = vector.multi_reduction <add>, %26, %cst_8 [2] : vector<8x8x8xf32> to vector<8x8xf32>
    %28 = vector.shape_cast %27 : vector<8x8xf32> to vector<8x8x1xf32>
    %29 = vector.broadcast %28 : vector<8x8x1xf32> to vector<8x8x8xf32>
    %30 = arith.divf %26, %29 : vector<8x8x8xf32>
    "tpu.trace_start"() <{level = 10 : i32, message = "gtu,gud->gtd"}> : () -> ()
    %cst_9 = arith.constant dense<0.000000e+00> : vector<8x8x8xf32>
    %31 = tpu.matmul %30, %14, %cst_9 {dimension_numbers = #tpu.dot_dimension_numbers<[2], [1], [1], [2], [0, 0, 0, 1, 1, 2], [0], [0]>} : vector<8x8x8xf32>, vector<8x8x8xf32>, vector<8x8x8xf32> -> vector<8x8x8xf32>
    "tpu.trace_stop"() : () -> ()
    %32 = vector.shape_cast %31 : vector<8x8x8xf32> to vector<4x16x8xf32>
    %33 = tpu.transpose %32, [1, 0, 2] : vector<4x16x8xf32> -> vector<16x4x8xf32>
    %34 = vector.shape_cast %33 : vector<16x4x8xf32> to vector<16x32xf32>
    %c0_10 = arith.constant 0 : index
    %c0_11 = arith.constant 0 : index
    %35 = vector.load %arg3[%c0_10, %c0_11] : memref<32x32xf32, #tpu.memory_space<vmem>>, vector<32x32xf32>
    %cst_12 = arith.constant dense<0.000000e+00> : vector<16x32xf32>
    %36 = tpu.matmul %34, %35, %cst_12 {dimension_numbers = #tpu.dot_dimension_numbers<[1], [0], [0], [1], [0, 0, 1, 1], [], []>} : vector<16x32xf32>, vector<32x32xf32>, vector<16x32xf32> -> vector<16x32xf32>
    %c0_13 = arith.constant 0 : index
    %c0_14 = arith.constant 0 : index
    %37 = vector.load %arg4[%c0_13, %c0_14] : memref<1x32xf32, #tpu.memory_space<vmem>>, vector<1x32xf32>
    %38 = vector.broadcast %37 : vector<1x32xf32> to vector<16x32xf32>
    %39 = arith.addf %36, %38 : vector<16x32xf32>
    %c0_15 = arith.constant 0 : index
    %c0_16 = arith.constant 0 : index
    %40 = vector.load %arg6[%c0_15, %c0_16] : memref<16x32xf32, #tpu.memory_space<vmem>>, vector<16x32xf32>
    tpu.vector_store %arg6[%c0_15, %c0_16], %39 {strides = array<i32>} : memref<16x32xf32, #tpu.memory_space<vmem>>, vector<16x32xf32>,
    return
  }
  func.func @transform_0(%arg0: i32) -> (i32, i32) {
    %c0_i32 = arith.constant 0 : i32
    %c0_i32_0 = arith.constant 0 : i32
    %c0_i32_1 = arith.constant 0 : i32
    return %c0_i32, %c0_i32_0 : i32, i32
  }
  func.func @transform_1(%arg0: i32) -> (i32, i32) {
    %c0_i32 = arith.constant 0 : i32
    %c0_i32_0 = arith.constant 0 : i32
    %c0_i32_1 = arith.constant 0 : i32
    return %c0_i32, %c0_i32_0 : i32, i32
  }
  func.func @transform_2(%arg0: i32) -> (i32, i32) {
    %c0_i32 = arith.constant 0 : i32
    %c0_i32_0 = arith.constant 0 : i32
    %c0_i32_1 = arith.constant 0 : i32
    return %c0_i32, %c0_i32_0 : i32, i32
  }
  func.func @transform_3(%arg0: i32) -> (i32, i32) {
    %c0_i32 = arith.constant 0 : i32
    %c0_i32_0 = arith.constant 0 : i32
    %c0_i32_1 = arith.constant 0 : i32
    return %c0_i32, %c0_i32_0 : i32, i32
  }
  func.func @transform_4(%arg0: i32) -> (i32, i32) {
    %c0_i32 = arith.constant 0 : i32
    %c0_i32_0 = arith.constant 0 : i32
    %c0_i32_1 = arith.constant 0 : i32
    return %c0_i32, %c0_i32_0 : i32, i32
  }
  func.func @transform_5(%arg0: i32) -> (i32, i32) {
    %c0_i32 = arith.constant 0 : i32
    %c0_i32_0 = arith.constant 0 : i32
    %c0_i32_1 = arith.constant 0 : i32
    return %c0_i32, %c0_i32_0 : i32, i32
  }
}

</mosaic_0001>

<llo_original>
// kernel: tpu_custom_call.1
$region0: #{tpu_custom_call.1}
  #allocation0 [shape = 'u32[]', space=smem, size = 0x4, offset = 0x4, fixed_abs, tag = 'smem constant byte address 0x4 - core index']
  #allocation1 [shape = 'u32[72,128]{1,0:T(1,128)}', space=vmem, size = 0x9000, scoped, tag = 'internal scratch']
  %s0 = inlined_call_operand.hbm [shape: f32[16,32], index: 0, kind: input, shape index: {}]
  %s1 = inlined_call_operand.hbm [shape: f32[32,96], index: 1, kind: input, shape index: {}]
  %s2 = inlined_call_operand.hbm [shape: f32[32,32], index: 2, kind: input, shape index: {}]
  %s3 = inlined_call_operand.vmem [shape: f32[1,32], index: 3, kind: input, shape index: {}]
  %s4 = inlined_call_operand.hbm [shape: f32[8,8], index: 4, kind: input, shape index: {}]
  %s5 = inlined_call_operand.hbm [shape: f32[16,32], index: 5, kind: output, shape index: {}]
  %s6 = sld [smem:[#allocation0]]
  $region46: #{tpu_custom_call.1} parent=0
    _
  %s8 = ssub.s32 1, %s6
  %s9 = scalar_select 0, %s8, %s6
  $region1: #{tpu_custom_call.1} parent=0
    #allocation2 [shape = 'u8[8192]{0}', space=vmem, size = 0x2000, scoped, tag = 'input window, operand 0, single buffered']
    #allocation3 [shape = 's32[1]{0}', space=sflag, size = 0x4, scoped, tag = 'scoped memory for tpu_custom_call.1']
    #allocation4 [shape = 's32[1]{0}', space=sflag, size = 0x4, scoped, tag = 'scoped memory for tpu_custom_call.1']
    #allocation5 [shape = 'u8[16384]{0}', space=vmem, size = 0x4000, scoped, tag = 'input window, operand 1, single buffered']
    #allocation6 [shape = 's32[1]{0}', space=sflag, size = 0x4, scoped, tag = 'scoped memory for tpu_custom_call.1']
    #allocation7 [shape = 'u8[16384]{0}', space=vmem, size = 0x4000, scoped, tag = 'input window, operand 2, single buffered']
    #allocation8 [shape = 'u8[4096]{0}', space=vmem, size = 0x1000, scoped, tag = 'input window, operand 4, single buffered']
    #allocation9 [shape = 's32[1]{0}', space=sflag, size = 0x4, scoped, tag = 'scoped memory for tpu_custom_call.1']
    #allocation10 [shape = 'u8[8192]{0}', space=vmem, size = 0x2000, scoped, tag = 'output window, operand 0, single buffered']
    %10 = vsyncpa [#allocation3], 0
    %11 = vsyncpa [#allocation6], 0
    %12 = vsyncpa [#allocation9], 0
    %13 = vsyncpa [#allocation4], 0
    // Predicated region
    $region2: #{tpu_custom_call.1} parent=1 // pred_check
      _
    $region3: #{tpu_custom_call.1} parent=1 // pred_check_branch
      %15 = sbr.rel (0) target = $region5
    $region4: #{tpu_custom_call.1} parent=1 // pred_region
      %17 = vsyncadd [#allocation3], 0
      %s18 = sshll.u32 %s0, 4
      %s19 = int_to_ptr.hbm [resolvable:$true] %s18
      %s20 = sshll.u32 [#allocation2], 4
      %s21 = int_to_ptr.vmem [resolvable:$true] %s20
      %26 = dma.hbm_to_vmem [thread:$0]  %s19, 256, %s21, [#allocation3], 128, 128, 8
    $region5: #{tpu_custom_call.1} parent=1 // pred_fallthru
      _
    // Predicated region
    $region6: #{tpu_custom_call.1} parent=1 // pred_check
      _
    $region7: #{tpu_custom_call.1} parent=1 // pred_check_branch
      %28 = sbr.rel (0) target = $region9
    $region8: #{tpu_custom_call.1} parent=1 // pred_region
      %30 = vsyncadd [#allocation6], 0
      %s31 = sshll.u32 %s1, 4
      %s32 = int_to_ptr.hbm [resolvable:$true] %s31
      %s33 = sshll.u32 [#allocation5], 4
      %s34 = int_to_ptr.vmem [resolvable:$true] %s33
      %39 = dma.hbm_to_vmem [thread:$0]  %s32, 512, %s34, [#allocation6], 128, 128, 8
    $region9: #{tpu_custom_call.1} parent=1 // pred_fallthru
      _
    // Predicated region
    $region10: #{tpu_custom_call.1} parent=1 // pred_check
      _
    $region11: #{tpu_custom_call.1} parent=1 // pred_check_branch
      %41 = sbr.rel (0) target = $region13
    $region12: #{tpu_custom_call.1} parent=1 // pred_region
      %43 = vsyncadd [#allocation6], 0
      %s44 = sshll.u32 %s2, 4
      %s45 = int_to_ptr.hbm [resolvable:$true] %s44
      %s46 = sshll.u32 [#allocation7], 4
      %s47 = int_to_ptr.vmem [resolvable:$true] %s46
      %52 = dma.hbm_to_vmem [thread:$0]  %s45, 512, %s47, [#allocation6], 128, 128, 8
    $region13: #{tpu_custom_call.1} parent=1 // pred_fallthru
      _
    // Predicated region
    $region14: #{tpu_custom_call.1} parent=1 // pred_check
      _
    $region15: #{tpu_custom_call.1} parent=1 // pred_check_branch
      %54 = sbr.rel (0) target = $region17
    $region16: #{tpu_custom_call.1} parent=1 // pred_region
      _
    $region17: #{tpu_custom_call.1} parent=1 // pred_fallthru
      _
    // Predicated region
    $region18: #{tpu_custom_call.1} parent=1 // pred_check
      _
    $region19: #{tpu_custom_call.1} parent=1 // pred_check_branch
      %56 = sbr.rel (0) target = $region21
    $region20: #{tpu_custom_call.1} parent=1 // pred_region
      %58 = vsyncadd [#allocation9], 0
      %s60 = sshll.u32 %s4, 4
      %s61 = int_to_ptr.hbm [resolvable:$true] %s60
      %s62 = sshll.u32 [#allocation8], 4
      %s63 = int_to_ptr.vmem [resolvable:$true] %s62
      %65 = dma.hbm_to_vmem [thread:$0]  %s61, 128, %s63, [#allocation9]
    $region21: #{tpu_custom_call.1} parent=1 // pred_fallthru
      _
    // Predicated region
    $region22: #{tpu_custom_call.1} parent=1 // pred_check
      _
    $region23: #{tpu_custom_call.1} parent=1 // pred_check_branch
      %67 = sbr.rel (0) target = $region25
    $region24: #{tpu_custom_call.1} parent=1 // pred_region
      %69 = dma.done [#allocation3], 256
    $region25: #{tpu_custom_call.1} parent=1 // pred_fallthru
      _
    // Predicated region
    $region26: #{tpu_custom_call.1} parent=1 // pred_check
      _
    $region27: #{tpu_custom_call.1} parent=1 // pred_check_branch
      %71 = sbr.rel (0) target = $region29
    $region28: #{tpu_custom_call.1} parent=1 // pred_region
      %73 = dma.done [#allocation6], 512
    $region29: #{tpu_custom_call.1} parent=1 // pred_fallthru
      _
    // Predicated region
    $region30: #{tpu_custom_call.1} parent=1 // pred_check
      _
    $region31: #{tpu_custom_call.1} parent=1 // pred_check_branch
      %75 = sbr.rel (0) target = $region33
    $region32: #{tpu_custom_call.1} parent=1 // pred_region
      %77 = dma.done [#allocation6], 512
    $region33: #{tpu_custom_call.1} parent=1 // pred_fallthru
      _
    // Predicated region
    $region34: #{tpu_custom_call.1} parent=1 // pred_check
      _
    $region35: #{tpu_custom_call.1} parent=1 // pred_check_branch
      %79 = sbr.rel (0) target = $region37
    $region36: #{tpu_custom_call.1} parent=1 // pred_region
      %81 = dma.done [#allocation9], 128
    $region37: #{tpu_custom_call.1} parent=1 // pred_fallthru
      _
    %v82 = vld [vmem:[#allocation2] sm:$0xff]
    %v83 = vld [vmem:[#allocation2 + $0x8] sm:$0xff]
    %v84 = vld [vmem:[#allocation5] sm:$0xff]
    %v85 = vld [vmem:[#allocation5 + $0x8] sm:$0xff]
    %v86 = vld [vmem:[#allocation5 + $0x10] sm:$0xff]
    %v87 = vld [vmem:[#allocation5 + $0x18] sm:$0xff]
    %vm88 = vcmask 261120
    %v90 = vsel %vm88, %v82, 0
    %v93 = vsel %vm88, %v83, 0
    %95 = vmatpush.msra.mxu0 0.0
    %96 = vmatpush.msra.mxu0 0.0
    %97 = vmatpush.msra.mxu0 0.0
    %98 = vmatpush.msra.mxu0 0.0
    %99 = vmatpush.msra.mxu0 0.0
    %100 = vmatpush.msra.mxu0 0.0
    %101 = vmatpush.msra.mxu0 0.0
    %102 = vmatpush.msra.mxu0 0.0
    %103 = vmatpush.msra.mxu0 0.0
    %104 = vmatpush.msra.mxu0 0.0
    %105 = vmatpush.msra.mxu0 0.0
    %106 = vmatpush.msra.mxu0 0.0
    %107 = vmatpush.msra.mxu0 %v87
    %108 = vmatpush.msra.mxu0 %v86
    %109 = vmatpush.msra.mxu0 %v85
    %110 = vmatpush.msra.mxu0 %v84
    %111 = vmatmul.f32.gmra.mxu0 %v90
    %v112 = vpop.f32.mrf.mxu0
    %v113 = vadd.f32 0.0, %v112
    %114 = vmatmul.f32.gmra.mxu0 %v93
    %v115 = vpop.f32.mrf.mxu0
    %v116 = vadd.f32 0.0, %v115
    %117 = vdwg.mxu0
    %120 = vrot.lane.b32.xlu0 %v113, 120
    %v121 = vpop.permute.xlu0 %120
    %122 = vrot.lane.b32.xlu0 %v116, 120
    %v123 = vpop.permute.xlu0 %122
    %126 = vrot.lane.b32.xlu0 %v113, 112
    %v127 = vpop.permute.xlu0 %126
    %128 = vrot.lane.b32.xlu0 %v116, 112
    %v129 = vpop.permute.xlu0 %128
    %132 = vrot.lane.b32.xlu0 %v113, 104
    %v133 = vpop.permute.xlu0 %132
    %134 = vrot.lane.b32.xlu0 %v116, 104
    %v135 = vpop.permute.xlu0 %134
    %v138 = vrot.slane %v127, 4
    %vm139 = vcmask 1047556
    %v140 = vsel %vm139, %v138, %v113
    %v141 = vrot.slane %v113, 4
    %v142 = vsel %vm139, %v127, %v141
    %v144 = vunpack.c.l.s4 1983009808
    %v145 = vunpack.c.0.s8 %v144
    %v146 = vperm.slane %v140, %v145
    %v148 = vunpack.c.l.s4 1983009808
    %v149 = vunpack.c.0.s8 %v148
    %v150 = vperm.slane %v142, %v149
    %v151 = vrot.slane %v133, 4
    %v152 = vsel %vm139, %v151, %v121
    %v153 = vrot.slane %v121, 4
    %v154 = vsel %vm139, %v133, %v153
    %v156 = vunpack.c.l.s4 1983009808
    %v157 = vunpack.c.0.s8 %v156
    %v158 = vperm.slane %v152, %v157
    %v160 = vunpack.c.l.s4 1983009808
    %v161 = vunpack.c.0.s8 %v160
    %v162 = vperm.slane %v154, %v161
    %v163 = vrot.slane %v158, 4
    %v164 = vsel %vm139, %v163, %v146
    %v165 = vrot.slane %v146, 4
    %v166 = vsel %vm139, %v158, %v165
    %v168 = vunpack.c.l.s4 1934713408
    %v169 = vunpack.c.0.s8 %v168
    %v170 = vperm.slane %v164, %v169
    %v172 = vunpack.c.l.s4 1934713408
    %v173 = vunpack.c.0.s8 %v172
    %v174 = vperm.slane %v166, %v173
    %v175 = vrot.slane %v162, 4
    %v176 = vsel %vm139, %v175, %v150
    %v177 = vrot.slane %v150, 4
    %v178 = vsel %vm139, %v162, %v177
    %v180 = vunpack.c.l.s4 1934713408
    %v181 = vunpack.c.0.s8 %v180
    %v182 = vperm.slane %v176, %v181
    %v184 = vunpack.c.l.s4 1934713408
    %v185 = vunpack.c.0.s8 %v184
    %v186 = vperm.slane %v178, %v185
    %v187 = vrot.slane %v170, 4
    %v188 = vsel %vm139, 0.0, %v187
    %v189 = vrot.slane %v174, 4
    %v190 = vsel %vm139, 0.0, %v189
    %v191 = vrot.slane %v182, 4
    %v192 = vsel %vm139, 0.0, %v191
    %v193 = vrot.slane %v186, 4
    %v194 = vsel %vm139, 0.0, %v193
    %v195 = vrot.slane %v129, 4
    %v196 = vsel %vm139, %v195, %v116
    %v197 = vrot.slane %v116, 4
    %v198 = vsel %vm139, %v129, %v197
    %v200 = vunpack.c.l.s4 1983009808
    %v201 = vunpack.c.0.s8 %v200
    %v202 = vperm.slane %v196, %v201
    %v204 = vunpack.c.l.s4 1983009808
    %v205 = vunpack.c.0.s8 %v204
    %v206 = vperm.slane %v198, %v205
    %v207 = vrot.slane %v135, 4
    %v208 = vsel %vm139, %v207, %v123
    %v209 = vrot.slane %v123, 4
    %v210 = vsel %vm139, %v135, %v209
    %v212 = vunpack.c.l.s4 1983009808
    %v213 = vunpack.c.0.s8 %v212
    %v214 = vperm.slane %v208, %v213
    %v216 = vunpack.c.l.s4 1983009808
    %v217 = vunpack.c.0.s8 %v216
    %v218 = vperm.slane %v210, %v217
    %v219 = vrot.slane %v214, 4
    %v220 = vsel %vm139, %v219, %v202
    %v221 = vrot.slane %v202, 4
    %v222 = vsel %vm139, %v214, %v221
    %v224 = vunpack.c.l.s4 1934713408
    %v225 = vunpack.c.0.s8 %v224
    %v226 = vperm.slane %v220, %v225
    %v228 = vunpack.c.l.s4 1934713408
    %v229 = vunpack.c.0.s8 %v228
    %v230 = vperm.slane %v222, %v229
    %v231 = vrot.slane %v218, 4
    %v232 = vsel %vm139, %v231, %v206
    %v233 = vrot.slane %v206, 4
    %v234 = vsel %vm139, %v218, %v233
    %v236 = vunpack.c.l.s4 1934713408
    %v237 = vunpack.c.0.s8 %v236
    %v238 = vperm.slane %v232, %v237
    %v240 = vunpack.c.l.s4 1934713408
    %v241 = vunpack.c.0.s8 %v240
    %v242 = vperm.slane %v234, %v241
    %v243 = vrot.slane %v226, 4
    %v244 = vsel %vm139, 0.0, %v243
    %v245 = vrot.slane %v230, 4
    %v246 = vsel %vm139, 0.0, %v245
    %v247 = vrot.slane %v238, 4
    %v248 = vsel %vm139, 0.0, %v247
    %v249 = vrot.slane %v242, 4
    %v250 = vsel %vm139, 0.0, %v249
    %v251 = vsel %vm139, %v189, %v170
    %v253 = vunpack.c.l.s4 1983009808
    %v254 = vunpack.c.0.s8 %v253
    %v255 = vperm.slane %v251, %v254
    %v256 = vrot.slane %v190, 4
    %v257 = vsel %vm139, %v256, %v188
    %v259 = vunpack.c.l.s4 1983009808
    %v260 = vunpack.c.0.s8 %v259
    %v261 = vperm.slane %v257, %v260
    %v262 = vsel %vm139, %v193, %v182
    %v264 = vunpack.c.l.s4 1983009808
    %v265 = vunpack.c.0.s8 %v264
    %v266 = vperm.slane %v262, %v265
    %v267 = vrot.slane %v194, 4
    %v268 = vsel %vm139, %v267, %v192
    %v270 = vunpack.c.l.s4 1983009808
    %v271 = vunpack.c.0.s8 %v270
    %v272 = vperm.slane %v268, %v271
    %v273 = vrot.slane %v261, 4
    %v274 = vsel %vm139, %v273, %v255
    %v275 = vrot.slane %v255, 4
    %v276 = vsel %vm139, %v261, %v275
    %v278 = vunpack.c.l.s4 1934713408
    %v279 = vunpack.c.0.s8 %v278
    %v280 = vperm.slane %v274, %v279
    %v282 = vunpack.c.l.s4 1934713408
    %v283 = vunpack.c.0.s8 %v282
    %v284 = vperm.slane %v276, %v283
    %v285 = vrot.slane %v272, 4
    %v286 = vsel %vm139, %v285, %v266
    %v287 = vrot.slane %v266, 4
    %v288 = vsel %vm139, %v272, %v287
    %v290 = vunpack.c.l.s4 1934713408
    %v291 = vunpack.c.0.s8 %v290
    %v292 = vperm.slane %v286, %v291
    %v294 = vunpack.c.l.s4 1934713408
    %v295 = vunpack.c.0.s8 %v294
    %v296 = vperm.slane %v288, %v295
    %v297 = vrot.slane %v292, 4
    %v298 = vsel %vm139, %v297, %v280
    %v299 = vrot.slane %v280, 4
    %v300 = vsel %vm139, %v292, %v299
    %v301 = vrot.slane %v296, 4
    %v302 = vsel %vm139, %v301, %v284
    %v303 = vrot.slane %v284, 4
    %v304 = vsel %vm139, %v296, %v303
    %v305 = vsel %vm139, %v245, %v226
    %v307 = vunpack.c.l.s4 1983009808
    %v308 = vunpack.c.0.s8 %v307
    %v309 = vperm.slane %v305, %v308
    %v310 = vrot.slane %v246, 4
    %v311 = vsel %vm139, %v310, %v244
    %v313 = vunpack.c.l.s4 1983009808
    %v314 = vunpack.c.0.s8 %v313
    %v315 = vperm.slane %v311, %v314
    %v316 = vsel %vm139, %v249, %v238
    %v318 = vunpack.c.l.s4 1983009808
    %v319 = vunpack.c.0.s8 %v318
    %v320 = vperm.slane %v316, %v319
    %v321 = vrot.slane %v250, 4
    %v322 = vsel %vm139, %v321, %v248
    %v324 = vunpack.c.l.s4 1983009808
    %v325 = vunpack.c.0.s8 %v324
    %v326 = vperm.slane %v322, %v325
    %v327 = vrot.slane %v315, 4
    %v328 = vsel %vm139, %v327, %v309
    %v329 = vrot.slane %v309, 4
    %v330 = vsel %vm139, %v315, %v329
    %v332 = vunpack.c.l.s4 1934713408
    %v333 = vunpack.c.0.s8 %v332
    %v334 = vperm.slane %v328, %v333
    %v336 = vunpack.c.l.s4 1934713408
    %v337 = vunpack.c.0.s8 %v336
    %v338 = vperm.slane %v330, %v337
    %v339 = vrot.slane %v326, 4
    %v340 = vsel %vm139, %v339, %v320
    %v341 = vrot.slane %v320, 4
    %v342 = vsel %vm139, %v326, %v341
    %v344 = vunpack.c.l.s4 1934713408
    %v345 = vunpack.c.0.s8 %v344
    %v346 = vperm.slane %v340, %v345
    %v348 = vunpack.c.l.s4 1934713408
    %v349 = vunpack.c.0.s8 %v348
    %v350 = vperm.slane %v342, %v349
    %v351 = vrot.slane %v346, 4
    %v352 = vsel %vm139, %v351, %v334
    %v353 = vrot.slane %v334, 4
    %v354 = vsel %vm139, %v346, %v353
    %v355 = vrot.slane %v350, 4
    %v356 = vsel %vm139, %v355, %v338
    %v357 = vrot.slane %v338, 4
    %v358 = vsel %vm139, %v350, %v357
    %359 = vrot.lane.b32.xlu0 %v113, 96
    %v360 = vpop.permute.xlu0 %359
    %361 = vrot.lane.b32.xlu0 %v116, 96
    %v362 = vpop.permute.xlu0 %361
    %363 = vrot.lane.b32.xlu0 %v121, 96
    %v364 = vpop.permute.xlu0 %363
    %365 = vrot.lane.b32.xlu0 %v123, 96
    %v366 = vpop.permute.xlu0 %365
    %367 = vrot.lane.b32.xlu0 %v127, 96
    %v368 = vpop.permute.xlu0 %367
    %369 = vrot.lane.b32.xlu0 %v129, 96
    %v370 = vpop.permute.xlu0 %369
    %371 = vrot.lane.b32.xlu0 %v133, 96
    %v372 = vpop.permute.xlu0 %371
    %373 = vrot.lane.b32.xlu0 %v135, 96
    %v374 = vpop.permute.xlu0 %373
    %v383 = vrot.slane %v368, 4
    %v384 = vsel %vm139, %v383, %v360
    %v385 = vrot.slane %v360, 4
    %v386 = vsel %vm139, %v368, %v385
    %v388 = vunpack.c.l.s4 1983009808
    %v389 = vunpack.c.0.s8 %v388
    %v390 = vperm.slane %v384, %v389
    %v392 = vunpack.c.l.s4 1983009808
    %v393 = vunpack.c.0.s8 %v392
    %v394 = vperm.slane %v386, %v393
    %v395 = vrot.slane %v372, 4
    %v396 = vsel %vm139, %v395, %v364
    %v397 = vrot.slane %v364, 4
    %v398 = vsel %vm139, %v372, %v397
    %v400 = vunpack.c.l.s4 1983009808
    %v401 = vunpack.c.0.s8 %v400
    %v402 = vperm.slane %v396, %v401
    %v404 = vunpack.c.l.s4 1983009808
    %v405 = vunpack.c.0.s8 %v404
    %v406 = vperm.slane %v398, %v405
    %v407 = vrot.slane %v402, 4
    %v408 = vsel %vm139, %v407, %v390
    %v409 = vrot.slane %v390, 4
    %v410 = vsel %vm139, %v402, %v409
    %v412 = vunpack.c.l.s4 1934713408
    %v413 = vunpack.c.0.s8 %v412
    %v414 = vperm.slane %v408, %v413
    %v416 = vunpack.c.l.s4 1934713408
    %v417 = vunpack.c.0.s8 %v416
    %v418 = vperm.slane %v410, %v417
    %v419 = vrot.slane %v406, 4
    %v420 = vsel %vm139, %v419, %v394
    %v421 = vrot.slane %v394, 4
    %v422 = vsel %vm139, %v406, %v421
    %v424 = vunpack.c.l.s4 1934713408
    %v425 = vunpack.c.0.s8 %v424
    %v426 = vperm.slane %v420, %v425
    %v428 = vunpack.c.l.s4 1934713408
    %v429 = vunpack.c.0.s8 %v428
    %v430 = vperm.slane %v422, %v429
    %v431 = vrot.slane %v414, 4
    %v432 = vsel %vm139, 0.0, %v431
    %v433 = vrot.slane %v418, 4
    %v434 = vsel %vm139, 0.0, %v433
    %v435 = vrot.slane %v426, 4
    %v436 = vsel %vm139, 0.0, %v435
    %v437 = vrot.slane %v430, 4
    %v438 = vsel %vm139, 0.0, %v437
    %v439 = vrot.slane %v370, 4
    %v440 = vsel %vm139, %v439, %v362
    %v441 = vrot.slane %v362, 4
    %v442 = vsel %vm139, %v370, %v441
    %v444 = vunpack.c.l.s4 1983009808
    %v445 = vunpack.c.0.s8 %v444
    %v446 = vperm.slane %v440, %v445
    %v448 = vunpack.c.l.s4 1983009808
    %v449 = vunpack.c.0.s8 %v448
    %v450 = vperm.slane %v442, %v449
    %v451 = vrot.slane %v374, 4
    %v452 = vsel %vm139, %v451, %v366
    %v453 = vrot.slane %v366, 4
    %v454 = vsel %vm139, %v374, %v453
    %v456 = vunpack.c.l.s4 1983009808
    %v457 = vunpack.c.0.s8 %v456
    %v458 = vperm.slane %v452, %v457
    %v460 = vunpack.c.l.s4 1983009808
    %v461 = vunpack.c.0.s8 %v460
    %v462 = vperm.slane %v454, %v461
    %v463 = vrot.slane %v458, 4
    %v464 = vsel %vm139, %v463, %v446
    %v465 = vrot.slane %v446, 4
    %v466 = vsel %vm139, %v458, %v465
    %v468 = vunpack.c.l.s4 1934713408
    %v469 = vunpack.c.0.s8 %v468
    %v470 = vperm.slane %v464, %v469
    %v472 = vunpack.c.l.s4 1934713408
    %v473 = vunpack.c.0.s8 %v472
    %v474 = vperm.slane %v466, %v473
    %v475 = vrot.slane %v462, 4
    %v476 = vsel %vm139, %v475, %v450
    %v477 = vrot.slane %v450, 4
    %v478 = vsel %vm139, %v462, %v477
    %v480 = vunpack.c.l.s4 1934713408
    %v481 = vunpack.c.0.s8 %v480
    %v482 = vperm.slane %v476, %v481
    %v484 = vunpack.c.l.s4 1934713408
    %v485 = vunpack.c.0.s8 %v484
    %v486 = vperm.slane %v478, %v485
    %v487 = vrot.slane %v470, 4
    %v488 = vsel %vm139, 0.0, %v487
    %v489 = vrot.slane %v474, 4
    %v490 = vsel %vm139, 0.0, %v489
    %v491 = vrot.slane %v482, 4
    %v492 = vsel %vm139, 0.0, %v491
    %v493 = vrot.slane %v486, 4
    %v494 = vsel %vm139, 0.0, %v493
    %v495 = vsel %vm139, %v433, %v414
    %v497 = vunpack.c.l.s4 1983009808
    %v498 = vunpack.c.0.s8 %v497
    %v499 = vperm.slane %v495, %v498
    %v500 = vrot.slane %v434, 4
    %v501 = vsel %vm139, %v500, %v432
    %v503 = vunpack.c.l.s4 1983009808
    %v504 = vunpack.c.0.s8 %v503
    %v505 = vperm.slane %v501, %v504
    %v506 = vsel %vm139, %v437, %v426
    %v508 = vunpack.c.l.s4 1983009808
    %v509 = vunpack.c.0.s8 %v508
    %v510 = vperm.slane %v506, %v509
    %v511 = vrot.slane %v438, 4
    %v512 = vsel %vm139, %v511, %v436
    %v514 = vunpack.c.l.s4 1983009808
    %v515 = vunpack.c.0.s8 %v514
    %v516 = vperm.slane %v512, %v515
    %v517 = vrot.slane %v505, 4
    %v518 = vsel %vm139, %v517, %v499
    %v519 = vrot.slane %v499, 4
    %v520 = vsel %vm139, %v505, %v519
    %v522 = vunpack.c.l.s4 1934713408
    %v523 = vunpack.c.0.s8 %v522
    %v524 = vperm.slane %v518, %v523
    %v526 = vunpack.c.l.s4 1934713408
    %v527 = vunpack.c.0.s8 %v526
    %v528 = vperm.slane %v520, %v527
    %v529 = vrot.slane %v516, 4
    %v530 = vsel %vm139, %v529, %v510
    %v531 = vrot.slane %v510, 4
    %v532 = vsel %vm139, %v516, %v531
    %v534 = vunpack.c.l.s4 1934713408
    %v535 = vunpack.c.0.s8 %v534
    %v536 = vperm.slane %v530, %v535
    %v538 = vunpack.c.l.s4 1934713408
    %v539 = vunpack.c.0.s8 %v538
    %v540 = vperm.slane %v532, %v539
    %v541 = vrot.slane %v536, 4
    %v542 = vsel %vm139, %v541, %v524
    %v543 = vrot.slane %v524, 4
    %v544 = vsel %vm139, %v536, %v543
    %v545 = vrot.slane %v540, 4
    %v546 = vsel %vm139, %v545, %v528
    %v547 = vrot.slane %v528, 4
    %v548 = vsel %vm139, %v540, %v547
    %v549 = vsel %vm139, %v489, %v470
    %v551 = vunpack.c.l.s4 1983009808
    %v552 = vunpack.c.0.s8 %v551
    %v553 = vperm.slane %v549, %v552
    %v554 = vrot.slane %v490, 4
    %v555 = vsel %vm139, %v554, %v488
    %v557 = vunpack.c.l.s4 1983009808
    %v558 = vunpack.c.0.s8 %v557
    %v559 = vperm.slane %v555, %v558
    %v560 = vsel %vm139, %v493, %v482
    %v562 = vunpack.c.l.s4 1983009808
    %v563 = vunpack.c.0.s8 %v562
    %v564 = vperm.slane %v560, %v563
    %v565 = vrot.slane %v494, 4
    %v566 = vsel %vm139, %v565, %v492
    %v568 = vunpack.c.l.s4 1983009808
    %v569 = vunpack.c.0.s8 %v568
    %v570 = vperm.slane %v566, %v569
    %v571 = vrot.slane %v559, 4
    %v572 = vsel %vm139, %v571, %v553
    %v573 = vrot.slane %v553, 4
    %v574 = vsel %vm139, %v559, %v573
    %v576 = vunpack.c.l.s4 1934713408
    %v577 = vunpack.c.0.s8 %v576
    %v578 = vperm.slane %v572, %v577
    %v580 = vunpack.c.l.s4 1934713408
    %v581 = vunpack.c.0.s8 %v580
    %v582 = vperm.slane %v574, %v581
    %v583 = vrot.slane %v570, 4
    %v584 = vsel %vm139, %v583, %v564
    %v585 = vrot.slane %v564, 4
    %v586 = vsel %vm139, %v570, %v585
    %v588 = vunpack.c.l.s4 1934713408
    %v589 = vunpack.c.0.s8 %v588
    %v590 = vperm.slane %v584, %v589
    %v592 = vunpack.c.l.s4 1934713408
    %v593 = vunpack.c.0.s8 %v592
    %v594 = vperm.slane %v586, %v593
    %v595 = vrot.slane %v590, 4
    %v596 = vsel %vm139, %v595, %v578
    %v597 = vrot.slane %v578, 4
    %v598 = vsel %vm139, %v590, %v597
    %v599 = vrot.slane %v594, 4
    %v600 = vsel %vm139, %v599, %v582
    %v601 = vrot.slane %v582, 4
    %v602 = vsel %vm139, %v594, %v601
    %603 = vrot.lane.b32.xlu0 %v113, 64
    %v604 = vpop.permute.xlu0 %603
    %605 = vrot.lane.b32.xlu0 %v116, 64
    %v606 = vpop.permute.xlu0 %605
    %607 = vrot.lane.b32.xlu0 %v121, 64
    %v608 = vpop.permute.xlu0 %607
    %609 = vrot.lane.b32.xlu0 %v123, 64
    %v610 = vpop.permute.xlu0 %609
    %611 = vrot.lane.b32.xlu0 %v127, 64
    %v612 = vpop.permute.xlu0 %611
    %613 = vrot.lane.b32.xlu0 %v129, 64
    %v614 = vpop.permute.xlu0 %613
    %615 = vrot.lane.b32.xlu0 %v133, 64
    %v616 = vpop.permute.xlu0 %615
    %617 = vrot.lane.b32.xlu0 %v135, 64
    %v618 = vpop.permute.xlu0 %617
    %v627 = vrot.slane %v612, 4
    %v628 = vsel %vm139, %v627, %v604
    %v629 = vrot.slane %v604, 4
    %v630 = vsel %vm139, %v612, %v629
    %v632 = vunpack.c.l.s4 1983009808
    %v633 = vunpack.c.0.s8 %v632
    %v634 = vperm.slane %v628, %v633
    %v636 = vunpack.c.l.s4 1983009808
    %v637 = vunpack.c.0.s8 %v636
    %v638 = vperm.slane %v630, %v637
    %v639 = vrot.slane %v616, 4
    %v640 = vsel %vm139, %v639, %v608
    %v641 = vrot.slane %v608, 4
    %v642 = vsel %vm139, %v616, %v641
    %v644 = vunpack.c.l.s4 1983009808
    %v645 = vunpack.c.0.s8 %v644
    %v646 = vperm.slane %v640, %v645
    %v648 = vunpack.c.l.s4 1983009808
    %v649 = vunpack.c.0.s8 %v648
    %v650 = vperm.slane %v642, %v649
    %v651 = vrot.slane %v646, 4
    %v652 = vsel %vm139, %v651, %v634
    %v653 = vrot.slane %v634, 4
    %v654 = vsel %vm139, %v646, %v653
    %v656 = vunpack.c.l.s4 1934713408
    %v657 = vunpack.c.0.s8 %v656
    %v658 = vperm.slane %v652, %v657
    %v660 = vunpack.c.l.s4 1934713408
    %v661 = vunpack.c.0.s8 %v660
    %v662 = vperm.slane %v654, %v661
    %v663 = vrot.slane %v650, 4
    %v664 = vsel %vm139, %v663, %v638
    %v665 = vrot.slane %v638, 4
    %v666 = vsel %vm139, %v650, %v665
    %v668 = vunpack.c.l.s4 1934713408
    %v669 = vunpack.c.0.s8 %v668
    %v670 = vperm.slane %v664, %v669
    %v672 = vunpack.c.l.s4 1934713408
    %v673 = vunpack.c.0.s8 %v672
    %v674 = vperm.slane %v666, %v673
    %v675 = vrot.slane %v658, 4
    %v676 = vsel %vm139, 0.0, %v675
    %v677 = vrot.slane %v662, 4
    %v678 = vsel %vm139, 0.0, %v677
    %v679 = vrot.slane %v670, 4
    %v680 = vsel %vm139, 0.0, %v679
    %v681 = vrot.slane %v674, 4
    %v682 = vsel %vm139, 0.0, %v681
    %v683 = vrot.slane %v614, 4
    %v684 = vsel %vm139, %v683, %v606
    %v685 = vrot.slane %v606, 4
    %v686 = vsel %vm139, %v614, %v685
    %v688 = vunpack.c.l.s4 1983009808
    %v689 = vunpack.c.0.s8 %v688
    %v690 = vperm.slane %v684, %v689
    %v692 = vunpack.c.l.s4 1983009808
    %v693 = vunpack.c.0.s8 %v692
    %v694 = vperm.slane %v686, %v693
    %v695 = vrot.slane %v618, 4
    %v696 = vsel %vm139, %v695, %v610
    %v697 = vrot.slane %v610, 4
    %v698 = vsel %vm139, %v618, %v697
    %v700 = vunpack.c.l.s4 1983009808
    %v701 = vunpack.c.0.s8 %v700
    %v702 = vperm.slane %v696, %v701
    %v704 = vunpack.c.l.s4 1983009808
    %v705 = vunpack.c.0.s8 %v704
    %v706 = vperm.slane %v698, %v705
    %v707 = vrot.slane %v702, 4
    %v708 = vsel %vm139, %v707, %v690
    %v709 = vrot.slane %v690, 4
    %v710 = vsel %vm139, %v702, %v709
    %v712 = vunpack.c.l.s4 1934713408
    %v713 = vunpack.c.0.s8 %v712
    %v714 = vperm.slane %v708, %v713
    %v716 = vunpack.c.l.s4 1934713408
    %v717 = vunpack.c.0.s8 %v716
    %v718 = vperm.slane %v710, %v717
    %v719 = vrot.slane %v706, 4
    %v720 = vsel %vm139, %v719, %v694
    %v721 = vrot.slane %v694, 4
    %v722 = vsel %vm139, %v706, %v721
    %v724 = vunpack.c.l.s4 1934713408
    %v725 = vunpack.c.0.s8 %v724
    %v726 = vperm.slane %v720, %v725
    %v728 = vunpack.c.l.s4 1934713408
    %v729 = vunpack.c.0.s8 %v728
    %v730 = vperm.slane %v722, %v729
    %v731 = vrot.slane %v714, 4
    %v732 = vsel %vm139, 0.0, %v731
    %v733 = vrot.slane %v718, 4
    %v734 = vsel %vm139, 0.0, %v733
    %v735 = vrot.slane %v726, 4
    %v736 = vsel %vm139, 0.0, %v735
    %v737 = vrot.slane %v730, 4
    %v738 = vsel %vm139, 0.0, %v737
    %v739 = vsel %vm139, %v677, %v658
    %v741 = vunpack.c.l.s4 1983009808
    %v742 = vunpack.c.0.s8 %v741
    %v743 = vperm.slane %v739, %v742
    %v744 = vrot.slane %v678, 4
    %v745 = vsel %vm139, %v744, %v676
    %v747 = vunpack.c.l.s4 1983009808
    %v748 = vunpack.c.0.s8 %v747
    %v749 = vperm.slane %v745, %v748
    %v750 = vsel %vm139, %v681, %v670
    %v752 = vunpack.c.l.s4 1983009808
    %v753 = vunpack.c.0.s8 %v752
    %v754 = vperm.slane %v750, %v753
    %v755 = vrot.slane %v682, 4
    %v756 = vsel %vm139, %v755, %v680
    %v758 = vunpack.c.l.s4 1983009808
    %v759 = vunpack.c.0.s8 %v758
    %v760 = vperm.slane %v756, %v759
    %v761 = vrot.slane %v749, 4
    %v762 = vsel %vm139, %v761, %v743
    %v763 = vrot.slane %v743, 4
    %v764 = vsel %vm139, %v749, %v763
    %v766 = vunpack.c.l.s4 1934713408
    %v767 = vunpack.c.0.s8 %v766
    %v768 = vperm.slane %v762, %v767
    %v770 = vunpack.c.l.s4 1934713408
    %v771 = vunpack.c.0.s8 %v770
    %v772 = vperm.slane %v764, %v771
    %v773 = vrot.slane %v760, 4
    %v774 = vsel %vm139, %v773, %v754
    %v775 = vrot.slane %v754, 4
    %v776 = vsel %vm139, %v760, %v775
    %v778 = vunpack.c.l.s4 1934713408
    %v779 = vunpack.c.0.s8 %v778
    %v780 = vperm.slane %v774, %v779
    %v782 = vunpack.c.l.s4 1934713408
    %v783 = vunpack.c.0.s8 %v782
    %v784 = vperm.slane %v776, %v783
    %v785 = vrot.slane %v780, 4
    %v786 = vsel %vm139, %v785, %v768
    %v787 = vrot.slane %v768, 4
    %v788 = vsel %vm139, %v780, %v787
    %v789 = vrot.slane %v784, 4
    %v790 = vsel %vm139, %v789, %v772
    %v791 = vrot.slane %v772, 4
    %v792 = vsel %vm139, %v784, %v791
    %v793 = vsel %vm139, %v733, %v714
    %v795 = vunpack.c.l.s4 1983009808
    %v796 = vunpack.c.0.s8 %v795
    %v797 = vperm.slane %v793, %v796
    %v798 = vrot.slane %v734, 4
    %v799 = vsel %vm139, %v798, %v732
    %v801 = vunpack.c.l.s4 1983009808
    %v802 = vunpack.c.0.s8 %v801
    %v803 = vperm.slane %v799, %v802
    %v804 = vsel %vm139, %v737, %v726
    %v806 = vunpack.c.l.s4 1983009808
    %v807 = vunpack.c.0.s8 %v806
    %v808 = vperm.slane %v804, %v807
    %v809 = vrot.slane %v738, 4
    %v810 = vsel %vm139, %v809, %v736
    %v812 = vunpack.c.l.s4 1983009808
    %v813 = vunpack.c.0.s8 %v812
    %v814 = vperm.slane %v810, %v813
    %v815 = vrot.slane %v803, 4
    %v816 = vsel %vm139, %v815, %v797
    %v817 = vrot.slane %v797, 4
    %v818 = vsel %vm139, %v803, %v817
    %v820 = vunpack.c.l.s4 1934713408
    %v821 = vunpack.c.0.s8 %v820
    %v822 = vperm.slane %v816, %v821
    %v824 = vunpack.c.l.s4 1934713408
    %v825 = vunpack.c.0.s8 %v824
    %v826 = vperm.slane %v818, %v825
    %v827 = vrot.slane %v814, 4
    %v828 = vsel %vm139, %v827, %v808
    %v829 = vrot.slane %v808, 4
    %v830 = vsel %vm139, %v814, %v829
    %v832 = vunpack.c.l.s4 1934713408
    %v833 = vunpack.c.0.s8 %v832
    %v834 = vperm.slane %v828, %v833
    %v836 = vunpack.c.l.s4 1934713408
    %v837 = vunpack.c.0.s8 %v836
    %v838 = vperm.slane %v830, %v837
    %v839 = vrot.slane %v834, 4
    %v840 = vsel %vm139, %v839, %v822
    %v841 = vrot.slane %v822, 4
    %v842 = vsel %vm139, %v834, %v841
    %v843 = vrot.slane %v838, 4
    %v844 = vsel %vm139, %v843, %v826
    %v845 = vrot.slane %v826, 4
    %v846 = vsel %vm139, %v838, %v845
    %vm847 = vcmask 64512
    %v849 = vsel %vm847, %v298, 0
    %v852 = vsel %vm847, %v542, 0
    %854 = vmatpush.xpose.msra.mxu0 0.0
    %855 = vmatpush.xpose.msra.mxu0 0.0
    %856 = vmatpush.xpose.msra.mxu0 0.0
    %857 = vmatpush.xpose.msra.mxu0 0.0
    %858 = vmatpush.xpose.msra.mxu0 0.0
    %859 = vmatpush.xpose.msra.mxu0 0.0
    %860 = vmatpush.xpose.msra.mxu0 0.0
    %861 = vmatpush.xpose.msra.mxu0 0.0
    %862 = vmatpush.xpose.msra.mxu0 0.0
    %863 = vmatpush.xpose.msra.mxu0 0.0
    %864 = vmatpush.xpose.msra.mxu0 0.0
    %865 = vmatpush.xpose.msra.mxu0 0.0
    %866 = vmatpush.xpose.msra.mxu0 0.0
    %867 = vmatpush.xpose.msra.mxu0 0.0
    %868 = vmatpush.xpose.msra.mxu0 0.0
    %869 = vmatpush.xpose.msra.mxu0 %v852
    %870 = vmatmul.f32.gmra.mxu0 %v849
    %v871 = vpop.f32.mrf.mxu0
    %v872 = vadd.f32 0.0, %v871
    %873 = vdwg.mxu0
    %v875 = vsel %vm847, %v352, 0
    %v878 = vsel %vm847, %v596, 0
    %880 = vmatpush.xpose.msra.mxu0 0.0
    %881 = vmatpush.xpose.msra.mxu0 0.0
    %882 = vmatpush.xpose.msra.mxu0 0.0
    %883 = vmatpush.xpose.msra.mxu0 0.0
    %884 = vmatpush.xpose.msra.mxu0 0.0
    %885 = vmatpush.xpose.msra.mxu0 0.0
    %886 = vmatpush.xpose.msra.mxu0 0.0
    %887 = vmatpush.xpose.msra.mxu0 0.0
    %888 = vmatpush.xpose.msra.mxu0 0.0
    %889 = vmatpush.xpose.msra.mxu0 0.0
    %890 = vmatpush.xpose.msra.mxu0 0.0
    %891 = vmatpush.xpose.msra.mxu0 0.0
    %892 = vmatpush.xpose.msra.mxu0 0.0
    %893 = vmatpush.xpose.msra.mxu0 0.0
    %894 = vmatpush.xpose.msra.mxu0 0.0
    %895 = vmatpush.xpose.msra.mxu0 %v878
    %896 = vmatmul.f32.gmra.mxu0 %v875
    %v897 = vpop.f32.mrf.mxu0
    %v898 = vadd.f32 0.0, %v897
    %899 = vdwg.mxu0
    %v901 = vsel %vm847, %v300, 0
    %v904 = vsel %vm847, %v544, 0
    %906 = vmatpush.xpose.msra.mxu0 0.0
    %907 = vmatpush.xpose.msra.mxu0 0.0
    %908 = vmatpush.xpose.msra.mxu0 0.0
    %909 = vmatpush.xpose.msra.mxu0 0.0
    %910 = vmatpush.xpose.msra.mxu0 0.0
    %911 = vmatpush.xpose.msra.mxu0 0.0
    %912 = vmatpush.xpose.msra.mxu0 0.0
    %913 = vmatpush.xpose.msra.mxu0 0.0
    %914 = vmatpush.xpose.msra.mxu0 0.0
    %915 = vmatpush.xpose.msra.mxu0 0.0
    %916 = vmatpush.xpose.msra.mxu0 0.0
    %917 = vmatpush.xpose.msra.mxu0 0.0
    %918 = vmatpush.xpose.msra.mxu0 0.0
    %919 = vmatpush.xpose.msra.mxu0 0.0
    %920 = vmatpush.xpose.msra.mxu0 0.0
    %921 = vmatpush.xpose.msra.mxu0 %v904
    %922 = vmatmul.f32.gmra.mxu0 %v901
    %v923 = vpop.f32.mrf.mxu0
    %v924 = vadd.f32 0.0, %v923
    %925 = vdwg.mxu0
    %v927 = vsel %vm847, %v354, 0
    %v930 = vsel %vm847, %v598, 0
    %932 = vmatpush.xpose.msra.mxu0 0.0
    %933 = vmatpush.xpose.msra.mxu0 0.0
    %934 = vmatpush.xpose.msra.mxu0 0.0
    %935 = vmatpush.xpose.msra.mxu0 0.0
    %936 = vmatpush.xpose.msra.mxu0 0.0
    %937 = vmatpush.xpose.msra.mxu0 0.0
    %938 = vmatpush.xpose.msra.mxu0 0.0
    %939 = vmatpush.xpose.msra.mxu0 0.0
    %940 = vmatpush.xpose.msra.mxu0 0.0
    %941 = vmatpush.xpose.msra.mxu0 0.0
    %942 = vmatpush.xpose.msra.mxu0 0.0
    %943 = vmatpush.xpose.msra.mxu0 0.0
    %944 = vmatpush.xpose.msra.mxu0 0.0
    %945 = vmatpush.xpose.msra.mxu0 0.0
    %946 = vmatpush.xpose.msra.mxu0 0.0
    %947 = vmatpush.xpose.msra.mxu0 %v930
    %948 = vmatmul.f32.gmra.mxu0 %v927
    %v949 = vpop.f32.mrf.mxu0
    %v950 = vadd.f32 0.0, %v949
    %951 = vdwg.mxu0
    %v953 = vsel %vm847, %v302, 0
    %v956 = vsel %vm847, %v546, 0
    %958 = vmatpush.xpose.msra.mxu0 0.0
    %959 = vmatpush.xpose.msra.mxu0 0.0
    %960 = vmatpush.xpose.msra.mxu0 0.0
    %961 = vmatpush.xpose.msra.mxu0 0.0
    %962 = vmatpush.xpose.msra.mxu0 0.0
    %963 = vmatpush.xpose.msra.mxu0 0.0
    %964 = vmatpush.xpose.msra.mxu0 0.0
    %965 = vmatpush.xpose.msra.mxu0 0.0
    %966 = vmatpush.xpose.msra.mxu0 0.0
    %967 = vmatpush.xpose.msra.mxu0 0.0
    %968 = vmatpush.xpose.msra.mxu0 0.0
    %969 = vmatpush.xpose.msra.mxu0 0.0
    %970 = vmatpush.xpose.msra.mxu0 0.0
    %971 = vmatpush.xpose.msra.mxu0 0.0
    %972 = vmatpush.xpose.msra.mxu0 0.0
    %973 = vmatpush.xpose.msra.mxu0 %v956
    %974 = vmatmul.f32.gmra.mxu0 %v953
    %v975 = vpop.f32.mrf.mxu0
    %v976 = vadd.f32 0.0, %v975
    %977 = vdwg.mxu0
    %v979 = vsel %vm847, %v356, 0
    %v982 = vsel %vm847, %v600, 0
    %984 = vmatpush.xpose.msra.mxu0 0.0
    %985 = vmatpush.xpose.msra.mxu0 0.0
    %986 = vmatpush.xpose.msra.mxu0 0.0
    %987 = vmatpush.xpose.msra.mxu0 0.0
    %988 = vmatpush.xpose.msra.mxu0 0.0
    %989 = vmatpush.xpose.msra.mxu0 0.0
    %990 = vmatpush.xpose.msra.mxu0 0.0
    %991 = vmatpush.xpose.msra.mxu0 0.0
    %992 = vmatpush.xpose.msra.mxu0 0.0
    %993 = vmatpush.xpose.msra.mxu0 0.0
    %994 = vmatpush.xpose.msra.mxu0 0.0
    %995 = vmatpush.xpose.msra.mxu0 0.0
    %996 = vmatpush.xpose.msra.mxu0 0.0
    %997 = vmatpush.xpose.msra.mxu0 0.0
    %998 = vmatpush.xpose.msra.mxu0 0.0
    %999 = vmatpush.xpose.msra.mxu0 %v982
    %1000 = vmatmul.f32.gmra.mxu0 %v979
    %v1001 = vpop.f32.mrf.mxu0
    %v1002 = vadd.f32 0.0, %v1001
    %1003 = vdwg.mxu0
    %v1005 = vsel %vm847, %v304, 0
    %v1008 = vsel %vm847, %v548, 0
    %1010 = vmatpush.xpose.msra.mxu0 0.0
    %1011 = vmatpush.xpose.msra.mxu0 0.0
    %1012 = vmatpush.xpose.msra.mxu0 0.0
    %1013 = vmatpush.xpose.msra.mxu0 0.0
    %1014 = vmatpush.xpose.msra.mxu0 0.0
    %1015 = vmatpush.xpose.msra.mxu0 0.0
    %1016 = vmatpush.xpose.msra.mxu0 0.0
    %1017 = vmatpush.xpose.msra.mxu0 0.0
    %1018 = vmatpush.xpose.msra.mxu0 0.0
    %1019 = vmatpush.xpose.msra.mxu0 0.0
    %1020 = vmatpush.xpose.msra.mxu0 0.0
    %1021 = vmatpush.xpose.msra.mxu0 0.0
    %1022 = vmatpush.xpose.msra.mxu0 0.0
    %1023 = vmatpush.xpose.msra.mxu0 0.0
    %1024 = vmatpush.xpose.msra.mxu0 0.0
    %1025 = vmatpush.xpose.msra.mxu0 %v1008
    %1026 = vmatmul.f32.gmra.mxu0 %v1005
    %v1027 = vpop.f32.mrf.mxu0
    %v1028 = vadd.f32 0.0, %v1027
    %1029 = vdwg.mxu0
    %v1031 = vsel %vm847, %v358, 0
    %v1034 = vsel %vm847, %v602, 0
    %1036 = vmatpush.xpose.msra.mxu0 0.0
    %1037 = vmatpush.xpose.msra.mxu0 0.0
    %1038 = vmatpush.xpose.msra.mxu0 0.0
    %1039 = vmatpush.xpose.msra.mxu0 0.0
    %1040 = vmatpush.xpose.msra.mxu0 0.0
    %1041 = vmatpush.xpose.msra.mxu0 0.0
    %1042 = vmatpush.xpose.msra.mxu0 0.0
    %1043 = vmatpush.xpose.msra.mxu0 0.0
    %1044 = vmatpush.xpose.msra.mxu0 0.0
    %1045 = vmatpush.xpose.msra.mxu0 0.0
    %1046 = vmatpush.xpose.msra.mxu0 0.0
    %1047 = vmatpush.xpose.msra.mxu0 0.0
    %1048 = vmatpush.xpose.msra.mxu0 0.0
    %1049 = vmatpush.xpose.msra.mxu0 0.0
    %1050 = vmatpush.xpose.msra.mxu0 0.0
    %1051 = vmatpush.xpose.msra.mxu0 %v1034
    %1052 = vmatmul.f32.gmra.mxu0 %v1031
    %v1053 = vpop.f32.mrf.mxu0
    %v1054 = vadd.f32 0.0, %v1053
    %1055 = vdwg.mxu0
    %v1056 = vmul.f32 %v872, 0.35355338
    %v1057 = vmul.f32 %v898, 0.35355338
    %v1058 = vmul.f32 %v924, 0.35355338
    %v1059 = vmul.f32 %v950, 0.35355338
    %v1060 = vmul.f32 %v976, 0.35355338
    %v1061 = vmul.f32 %v1002, 0.35355338
    %v1062 = vmul.f32 %v1028, 0.35355338
    %v1063 = vmul.f32 %v1054, 0.35355338
    %v1064 = vld [vmem:[#allocation8] sm:$0xff]
    %v1065 = vadd.f32 %v1056, %v1064
    %v1066 = vadd.f32 %v1057, %v1064
    %v1067 = vadd.f32 %v1058, %v1064
    %v1068 = vadd.f32 %v1059, %v1064
    %v1069 = vadd.f32 %v1060, %v1064
    %v1070 = vadd.f32 %v1061, %v1064
    %v1071 = vadd.f32 %v1062, %v1064
    %v1072 = vadd.f32 %v1063, %v1064
    %v1073 = vsel %vm847, %v1065, -inf
    %1074 = vmax.xlane.f32.xlu0 %v1073
    %v1075 = vpop.xlane.xlu0 %1074
    %v1076 = vsel %vm847, %v1066, -inf
    %1077 = vmax.xlane.f32.xlu0 %v1076
    %v1078 = vpop.xlane.xlu0 %1077
    %v1079 = vsel %vm847, %v1067, -inf
    %1080 = vmax.xlane.f32.xlu0 %v1079
    %v1081 = vpop.xlane.xlu0 %1080
    %v1082 = vsel %vm847, %v1068, -inf
    %1083 = vmax.xlane.f32.xlu0 %v1082
    %v1084 = vpop.xlane.xlu0 %1083
    %v1085 = vsel %vm847, %v1069, -inf
    %1086 = vmax.xlane.f32.xlu0 %v1085
    %v1087 = vpop.xlane.xlu0 %1086
    %v1088 = vsel %vm847, %v1070, -inf
    %1089 = vmax.xlane.f32.xlu0 %v1088
    %v1090 = vpop.xlane.xlu0 %1089
    %v1091 = vsel %vm847, %v1071, -inf
    %1092 = vmax.xlane.f32.xlu0 %v1091
    %v1093 = vpop.xlane.xlu0 %1092
    %v1094 = vsel %vm847, %v1072, -inf
    %1095 = vmax.xlane.f32.xlu0 %v1094
    %v1096 = vpop.xlane.xlu0 %1095
    %v1097 = vsub.f32 %v1065, %v1075
    %v1098 = vsub.f32 %v1066, %v1078
    %v1099 = vsub.f32 %v1067, %v1081
    %v1100 = vsub.f32 %v1068, %v1084
    %v1101 = vsub.f32 %v1069, %v1087
    %v1102 = vsub.f32 %v1070, %v1090
    %v1103 = vsub.f32 %v1071, %v1093
    %v1104 = vsub.f32 %v1072, %v1096
    %v1105 = vmul.f32 %v1097, 1.442695
    %v1106 = vpow.pop %v1105
    %v1107 = vmul.f32 %v1098, 1.442695
    %v1108 = vpow.pop %v1107
    %v1109 = vmul.f32 %v1099, 1.442695
    %v1110 = vpow.pop %v1109
    %v1111 = vmul.f32 %v1100, 1.442695
    %v1112 = vpow.pop %v1111
    %v1113 = vmul.f32 %v1101, 1.442695
    %v1114 = vpow.pop %v1113
    %v1115 = vmul.f32 %v1102, 1.442695
    %v1116 = vpow.pop %v1115
    %v1117 = vmul.f32 %v1103, 1.442695
    %v1118 = vpow.pop %v1117
    %v1119 = vmul.f32 %v1104, 1.442695
    %v1120 = vpow.pop %v1119
    %v1121 = vsel %vm847, %v1106, 0.0
    %1122 = vadd.xlane.f32.xlu0 %v1121
    %v1123 = vpop.xlane.xlu0 %1122
    %v1124 = vsel %vm847, %v1108, 0.0
    %1125 = vadd.xlane.f32.xlu0 %v1124
    %v1126 = vpop.xlane.xlu0 %1125
    %v1127 = vsel %vm847, %v1110, 0.0
    %1128 = vadd.xlane.f32.xlu0 %v1127
    %v1129 = vpop.xlane.xlu0 %1128
    %v1130 = vsel %vm847, %v1112, 0.0
    %1131 = vadd.xlane.f32.xlu0 %v1130
    %v1132 = vpop.xlane.xlu0 %1131
    %v1133 = vsel %vm847, %v1114, 0.0
    %1134 = vadd.xlane.f32.xlu0 %v1133
    %v1135 = vpop.xlane.xlu0 %1134
    %v1136 = vsel %vm847, %v1116, 0.0
    %1137 = vadd.xlane.f32.xlu0 %v1136
    %v1138 = vpop.xlane.xlu0 %1137
    %v1139 = vsel %vm847, %v1118, 0.0
    %1140 = vadd.xlane.f32.xlu0 %v1139
    %v1141 = vpop.xlane.xlu0 %1140
    %v1142 = vsel %vm847, %v1120, 0.0
    %1143 = vadd.xlane.f32.xlu0 %v1142
    %v1144 = vpop.xlane.xlu0 %1143
    %v1145 = vrcp.pop %v1123
    %v1146 = vmul.f32 %v1123, %v1145
    %v1147 = vsub.f32 1.0, %v1146
    %v1148 = vmul.f32 %v1145, %v1147
    %v1149 = vadd.f32 %v1145, %v1148
    %vm1150 = vweird.f32 %v1123
    %vm1151 = vweird.f32 %v1145
    %vm1152 = vmor %vm1150, %vm1151
    %v1153 = vsel %vm1152, %v1145, %v1149
    %v1154 = vand.u32 2147483647, %v1123
    %vm1155 = vcmp.eq.f32.partialorder %v1154, 8.507059e+37
    %v1156 = vand.u32 %v1123, 2147483648
    %v1157 = vor.u32 1.1754944e-38, %v1156
    %v1158 = vsel %vm1155, %v1157, %v1153
    %v1159 = vmul.f32 %v1106, %v1158
    %v1160 = vrcp.pop %v1126
    %v1161 = vmul.f32 %v1126, %v1160
    %v1162 = vsub.f32 1.0, %v1161
    %v1163 = vmul.f32 %v1160, %v1162
    %v1164 = vadd.f32 %v1160, %v1163
    %vm1165 = vweird.f32 %v1126
    %vm1166 = vweird.f32 %v1160
    %vm1167 = vmor %vm1165, %vm1166
    %v1168 = vsel %vm1167, %v1160, %v1164
    %v1169 = vand.u32 2147483647, %v1126
    %vm1170 = vcmp.eq.f32.partialorder %v1169, 8.507059e+37
    %v1171 = vand.u32 %v1126, 2147483648
    %v1172 = vor.u32 1.1754944e-38, %v1171
    %v1173 = vsel %vm1170, %v1172, %v1168
    %v1174 = vmul.f32 %v1108, %v1173
    %v1175 = vrcp.pop %v1129
    %v1176 = vmul.f32 %v1129, %v1175
    %v1177 = vsub.f32 1.0, %v1176
    %v1178 = vmul.f32 %v1175, %v1177
    %v1179 = vadd.f32 %v1175, %v1178
    %vm1180 = vweird.f32 %v1129
    %vm1181 = vweird.f32 %v1175
    %vm1182 = vmor %vm1180, %vm1181
    %v1183 = vsel %vm1182, %v1175, %v1179
    %v1184 = vand.u32 2147483647, %v1129
    %vm1185 = vcmp.eq.f32.partialorder %v1184, 8.507059e+37
    %v1186 = vand.u32 %v1129, 2147483648
    %v1187 = vor.u32 1.1754944e-38, %v1186
    %v1188 = vsel %vm1185, %v1187, %v1183
    %v1189 = vmul.f32 %v1110, %v1188
    %v1190 = vrcp.pop %v1132
    %v1191 = vmul.f32 %v1132, %v1190
    %v1192 = vsub.f32 1.0, %v1191
    %v1193 = vmul.f32 %v1190, %v1192
    %v1194 = vadd.f32 %v1190, %v1193
    %vm1195 = vweird.f32 %v1132
    %vm1196 = vweird.f32 %v1190
    %vm1197 = vmor %vm1195, %vm1196
    %v1198 = vsel %vm1197, %v1190, %v1194
    %v1199 = vand.u32 2147483647, %v1132
    %vm1200 = vcmp.eq.f32.partialorder %v1199, 8.507059e+37
    %v1201 = vand.u32 %v1132, 2147483648
    %v1202 = vor.u32 1.1754944e-38, %v1201
    %v1203 = vsel %vm1200, %v1202, %v1198
    %v1204 = vmul.f32 %v1112, %v1203
    %v1205 = vrcp.pop %v1135
    %v1206 = vmul.f32 %v1135, %v1205
    %v1207 = vsub.f32 1.0, %v1206
    %v1208 = vmul.f32 %v1205, %v1207
    %v1209 = vadd.f32 %v1205, %v1208
    %vm1210 = vweird.f32 %v1135
    %vm1211 = vweird.f32 %v1205
    %vm1212 = vmor %vm1210, %vm1211
    %v1213 = vsel %vm1212, %v1205, %v1209
    %v1214 = vand.u32 2147483647, %v1135
    %vm1215 = vcmp.eq.f32.partialorder %v1214, 8.507059e+37
    %v1216 = vand.u32 %v1135, 2147483648
    %v1217 = vor.u32 1.1754944e-38, %v1216
    %v1218 = vsel %vm1215, %v1217, %v1213
    %v1219 = vmul.f32 %v1114, %v1218
    %v1220 = vrcp.pop %v1138
    %v1221 = vmul.f32 %v1138, %v1220
    %v1222 = vsub.f32 1.0, %v1221
    %v1223 = vmul.f32 %v1220, %v1222
    %v1224 = vadd.f32 %v1220, %v1223
    %vm1225 = vweird.f32 %v1138
    %vm1226 = vweird.f32 %v1220
    %vm1227 = vmor %vm1225, %vm1226
    %v1228 = vsel %vm1227, %v1220, %v1224
    %v1229 = vand.u32 2147483647, %v1138
    %vm1230 = vcmp.eq.f32.partialorder %v1229, 8.507059e+37
    %v1231 = vand.u32 %v1138, 2147483648
    %v1232 = vor.u32 1.1754944e-38, %v1231
    %v1233 = vsel %vm1230, %v1232, %v1228
    %v1234 = vmul.f32 %v1116, %v1233
    %v1235 = vrcp.pop %v1141
    %v1236 = vmul.f32 %v1141, %v1235
    %v1237 = vsub.f32 1.0, %v1236
    %v1238 = vmul.f32 %v1235, %v1237
    %v1239 = vadd.f32 %v1235, %v1238
    %vm1240 = vweird.f32 %v1141
    %vm1241 = vweird.f32 %v1235
    %vm1242 = vmor %vm1240, %vm1241
    %v1243 = vsel %vm1242, %v1235, %v1239
    %v1244 = vand.u32 2147483647, %v1141
    %vm1245 = vcmp.eq.f32.partialorder %v1244, 8.507059e+37
    %v1246 = vand.u32 %v1141, 2147483648
    %v1247 = vor.u32 1.1754944e-38, %v1246
    %v1248 = vsel %vm1245, %v1247, %v1243
    %v1249 = vmul.f32 %v1118, %v1248
    %v1250 = vrcp.pop %v1144
    %v1251 = vmul.f32 %v1144, %v1250
    %v1252 = vsub.f32 1.0, %v1251
    %v1253 = vmul.f32 %v1250, %v1252
    %v1254 = vadd.f32 %v1250, %v1253
    %vm1255 = vweird.f32 %v1144
    %vm1256 = vweird.f32 %v1250
    %vm1257 = vmor %vm1255, %vm1256
    %v1258 = vsel %vm1257, %v1250, %v1254
    %v1259 = vand.u32 2147483647, %v1144
    %vm1260 = vcmp.eq.f32.partialorder %v1259, 8.507059e+37
    %v1261 = vand.u32 %v1144, 2147483648
    %v1262 = vor.u32 1.1754944e-38, %v1261
    %v1263 = vsel %vm1260, %v1262, %v1258
    %v1264 = vmul.f32 %v1120, %v1263
    %v1266 = vsel %vm847, %v1159, 0
    %1268 = vmatpush.msra.mxu0 0.0
    %1269 = vmatpush.msra.mxu0 0.0
    %1270 = vmatpush.msra.mxu0 0.0
    %1271 = vmatpush.msra.mxu0 0.0
    %1272 = vmatpush.msra.mxu0 0.0
    %1273 = vmatpush.msra.mxu0 0.0
    %1274 = vmatpush.msra.mxu0 0.0
    %1275 = vmatpush.msra.mxu0 0.0
    %1276 = vmatpush.msra.mxu0 0.0
    %1277 = vmatpush.msra.mxu0 0.0
    %1278 = vmatpush.msra.mxu0 0.0
    %1279 = vmatpush.msra.mxu0 0.0
    %1280 = vmatpush.msra.mxu0 0.0
    %1281 = vmatpush.msra.mxu0 0.0
    %1282 = vmatpush.msra.mxu0 0.0
    %1283 = vmatpush.msra.mxu0 %v786
    %1284 = vmatmul.f32.gmra.mxu0 %v1266
    %v1285 = vpop.f32.mrf.mxu0
    %v1286 = vadd.f32 0.0, %v1285
    %1287 = vdwg.mxu0
    %v1289 = vsel %vm847, %v1174, 0
    %1291 = vmatpush.msra.mxu0 0.0
    %1292 = vmatpush.msra.mxu0 0.0
    %1293 = vmatpush.msra.mxu0 0.0
    %1294 = vmatpush.msra.mxu0 0.0
    %1295 = vmatpush.msra.mxu0 0.0
    %1296 = vmatpush.msra.mxu0 0.0
    %1297 = vmatpush.msra.mxu0 0.0
    %1298 = vmatpush.msra.mxu0 0.0
    %1299 = vmatpush.msra.mxu0 0.0
    %1300 = vmatpush.msra.mxu0 0.0
    %1301 = vmatpush.msra.mxu0 0.0
    %1302 = vmatpush.msra.mxu0 0.0
    %1303 = vmatpush.msra.mxu0 0.0
    %1304 = vmatpush.msra.mxu0 0.0
    %1305 = vmatpush.msra.mxu0 0.0
    %1306 = vmatpush.msra.mxu0 %v840
    %1307 = vmatmul.f32.gmra.mxu0 %v1289
    %v1308 = vpop.f32.mrf.mxu0
    %v1309 = vadd.f32 0.0, %v1308
    %1310 = vdwg.mxu0
    %v1312 = vsel %vm847, %v1189, 0
    %1314 = vmatpush.msra.mxu0 0.0
    %1315 = vmatpush.msra.mxu0 0.0
    %1316 = vmatpush.msra.mxu0 0.0
    %1317 = vmatpush.msra.mxu0 0.0
    %1318 = vmatpush.msra.mxu0 0.0
    %1319 = vmatpush.msra.mxu0 0.0
    %1320 = vmatpush.msra.mxu0 0.0
    %1321 = vmatpush.msra.mxu0 0.0
    %1322 = vmatpush.msra.mxu0 0.0
    %1323 = vmatpush.msra.mxu0 0.0
    %1324 = vmatpush.msra.mxu0 0.0
    %1325 = vmatpush.msra.mxu0 0.0
    %1326 = vmatpush.msra.mxu0 0.0
    %1327 = vmatpush.msra.mxu0 0.0
    %1328 = vmatpush.msra.mxu0 0.0
    %1329 = vmatpush.msra.mxu0 %v788
    %1330 = vmatmul.f32.gmra.mxu0 %v1312
    %v1331 = vpop.f32.mrf.mxu0
    %v1332 = vadd.f32 0.0, %v1331
    %1333 = vdwg.mxu0
    %v1335 = vsel %vm847, %v1204, 0
    %1337 = vmatpush.msra.mxu0 0.0
    %1338 = vmatpush.msra.mxu0 0.0
    %1339 = vmatpush.msra.mxu0 0.0
    %1340 = vmatpush.msra.mxu0 0.0
    %1341 = vmatpush.msra.mxu0 0.0
    %1342 = vmatpush.msra.mxu0 0.0
    %1343 = vmatpush.msra.mxu0 0.0
    %1344 = vmatpush.msra.mxu0 0.0
    %1345 = vmatpush.msra.mxu0 0.0
    %1346 = vmatpush.msra.mxu0 0.0
    %1347 = vmatpush.msra.mxu0 0.0
    %1348 = vmatpush.msra.mxu0 0.0
    %1349 = vmatpush.msra.mxu0 0.0
    %1350 = vmatpush.msra.mxu0 0.0
    %1351 = vmatpush.msra.mxu0 0.0
    %1352 = vmatpush.msra.mxu0 %v842
    %1353 = vmatmul.f32.gmra.mxu0 %v1335
    %v1354 = vpop.f32.mrf.mxu0
    %v1355 = vadd.f32 0.0, %v1354
    %1356 = vdwg.mxu0
    %v1358 = vsel %vm847, %v1219, 0
    %1360 = vmatpush.msra.mxu0 0.0
    %1361 = vmatpush.msra.mxu0 0.0
    %1362 = vmatpush.msra.mxu0 0.0
    %1363 = vmatpush.msra.mxu0 0.0
    %1364 = vmatpush.msra.mxu0 0.0
    %1365 = vmatpush.msra.mxu0 0.0
    %1366 = vmatpush.msra.mxu0 0.0
    %1367 = vmatpush.msra.mxu0 0.0
    %1368 = vmatpush.msra.mxu0 0.0
    %1369 = vmatpush.msra.mxu0 0.0
    %1370 = vmatpush.msra.mxu0 0.0
    %1371 = vmatpush.msra.mxu0 0.0
    %1372 = vmatpush.msra.mxu0 0.0
    %1373 = vmatpush.msra.mxu0 0.0
    %1374 = vmatpush.msra.mxu0 0.0
    %1375 = vmatpush.msra.mxu0 %v790
    %1376 = vmatmul.f32.gmra.mxu0 %v1358
    %v1377 = vpop.f32.mrf.mxu0
    %v1378 = vadd.f32 0.0, %v1377
    %1379 = vdwg.mxu0
    %v1381 = vsel %vm847, %v1234, 0
    %1383 = vmatpush.msra.mxu0 0.0
    %1384 = vmatpush.msra.mxu0 0.0
    %1385 = vmatpush.msra.mxu0 0.0
    %1386 = vmatpush.msra.mxu0 0.0
    %1387 = vmatpush.msra.mxu0 0.0
    %1388 = vmatpush.msra.mxu0 0.0
    %1389 = vmatpush.msra.mxu0 0.0
    %1390 = vmatpush.msra.mxu0 0.0
    %1391 = vmatpush.msra.mxu0 0.0
    %1392 = vmatpush.msra.mxu0 0.0
    %1393 = vmatpush.msra.mxu0 0.0
    %1394 = vmatpush.msra.mxu0 0.0
    %1395 = vmatpush.msra.mxu0 0.0
    %1396 = vmatpush.msra.mxu0 0.0
    %1397 = vmatpush.msra.mxu0 0.0
    %1398 = vmatpush.msra.mxu0 %v844
    %1399 = vmatmul.f32.gmra.mxu0 %v1381
    %v1400 = vpop.f32.mrf.mxu0
    %v1401 = vadd.f32 0.0, %v1400
    %1402 = vdwg.mxu0
    %v1404 = vsel %vm847, %v1249, 0
    %1406 = vmatpush.msra.mxu0 0.0
    %1407 = vmatpush.msra.mxu0 0.0
    %1408 = vmatpush.msra.mxu0 0.0
    %1409 = vmatpush.msra.mxu0 0.0
    %1410 = vmatpush.msra.mxu0 0.0
    %1411 = vmatpush.msra.mxu0 0.0
    %1412 = vmatpush.msra.mxu0 0.0
    %1413 = vmatpush.msra.mxu0 0.0
    %1414 = vmatpush.msra.mxu0 0.0
    %1415 = vmatpush.msra.mxu0 0.0
    %1416 = vmatpush.msra.mxu0 0.0
    %1417 = vmatpush.msra.mxu0 0.0
    %1418 = vmatpush.msra.mxu0 0.0
    %1419 = vmatpush.msra.mxu0 0.0
    %1420 = vmatpush.msra.mxu0 0.0
    %1421 = vmatpush.msra.mxu0 %v792
    %1422 = vmatmul.f32.gmra.mxu0 %v1404
    %v1423 = vpop.f32.mrf.mxu0
    %v1424 = vadd.f32 0.0, %v1423
    %1425 = vdwg.mxu0
    %v1427 = vsel %vm847, %v1264, 0
    %1429 = vmatpush.msra.mxu0 0.0
    %1430 = vmatpush.msra.mxu0 0.0
    %1431 = vmatpush.msra.mxu0 0.0
    %1432 = vmatpush.msra.mxu0 0.0
    %1433 = vmatpush.msra.mxu0 0.0
    %1434 = vmatpush.msra.mxu0 0.0
    %1435 = vmatpush.msra.mxu0 0.0
    %1436 = vmatpush.msra.mxu0 0.0
    %1437 = vmatpush.msra.mxu0 0.0
    %1438 = vmatpush.msra.mxu0 0.0
    %1439 = vmatpush.msra.mxu0 0.0
    %1440 = vmatpush.msra.mxu0 0.0
    %1441 = vmatpush.msra.mxu0 0.0
    %1442 = vmatpush.msra.mxu0 0.0
    %1443 = vmatpush.msra.mxu0 0.0
    %1444 = vmatpush.msra.mxu0 %v846
    %1445 = vmatmul.f32.gmra.mxu0 %v1427
    %v1446 = vpop.f32.mrf.mxu0
    %v1447 = vadd.f32 0.0, %v1446
    %1448 = vdwg.mxu0
    %v1449 = vrot.slane %v1378, 4
    %v1450 = vsel %vm139, %v1449, %v1286
    %v1451 = vrot.slane %v1286, 4
    %v1452 = vsel %vm139, %v1378, %v1451
    %v1454 = vunpack.c.l.s4 1983009808
    %v1455 = vunpack.c.0.s8 %v1454
    %v1456 = vperm.slane %v1450, %v1455
    %v1458 = vunpack.c.l.s4 1983009808
    %v1459 = vunpack.c.0.s8 %v1458
    %v1460 = vperm.slane %v1452, %v1459
    %v1461 = vrot.slane %v1424, 4
    %v1462 = vsel %vm139, %v1461, %v1332
    %v1463 = vrot.slane %v1332, 4
    %v1464 = vsel %vm139, %v1424, %v1463
    %v1466 = vunpack.c.l.s4 1983009808
    %v1467 = vunpack.c.0.s8 %v1466
    %v1468 = vperm.slane %v1462, %v1467
    %v1470 = vunpack.c.l.s4 1983009808
    %v1471 = vunpack.c.0.s8 %v1470
    %v1472 = vperm.slane %v1464, %v1471
    %v1473 = vrot.slane %v1468, 4
    %v1474 = vsel %vm139, %v1473, %v1456
    %v1475 = vrot.slane %v1456, 4
    %v1476 = vsel %vm139, %v1468, %v1475
    %v1478 = vunpack.c.l.s4 1934713408
    %v1479 = vunpack.c.0.s8 %v1478
    %v1480 = vperm.slane %v1474, %v1479
    %v1482 = vunpack.c.l.s4 1934713408
    %v1483 = vunpack.c.0.s8 %v1482
    %v1484 = vperm.slane %v1476, %v1483
    %v1485 = vrot.slane %v1472, 4
    %v1486 = vsel %vm139, %v1485, %v1460
    %v1487 = vrot.slane %v1460, 4
    %v1488 = vsel %vm139, %v1472, %v1487
    %v1490 = vunpack.c.l.s4 1934713408
    %v1491 = vunpack.c.0.s8 %v1490
    %v1492 = vperm.slane %v1486, %v1491
    %v1494 = vunpack.c.l.s4 1934713408
    %v1495 = vunpack.c.0.s8 %v1494
    %v1496 = vperm.slane %v1488, %v1495
    %v1497 = vrot.slane %v1480, 4
    %v1498 = vsel %vm139, 0.0, %v1497
    %v1499 = vrot.slane %v1484, 4
    %v1500 = vsel %vm139, 0.0, %v1499
    %v1501 = vrot.slane %v1492, 4
    %v1502 = vsel %vm139, 0.0, %v1501
    %v1503 = vrot.slane %v1496, 4
    %v1504 = vsel %vm139, 0.0, %v1503
    %v1505 = vrot.slane %v1401, 4
    %v1506 = vsel %vm139, %v1505, %v1309
    %v1507 = vrot.slane %v1309, 4
    %v1508 = vsel %vm139, %v1401, %v1507
    %v1510 = vunpack.c.l.s4 1983009808
    %v1511 = vunpack.c.0.s8 %v1510
    %v1512 = vperm.slane %v1506, %v1511
    %v1514 = vunpack.c.l.s4 1983009808
    %v1515 = vunpack.c.0.s8 %v1514
    %v1516 = vperm.slane %v1508, %v1515
    %v1517 = vrot.slane %v1447, 4
    %v1518 = vsel %vm139, %v1517, %v1355
    %v1519 = vrot.slane %v1355, 4
    %v1520 = vsel %vm139, %v1447, %v1519
    %v1522 = vunpack.c.l.s4 1983009808
    %v1523 = vunpack.c.0.s8 %v1522
    %v1524 = vperm.slane %v1518, %v1523
    %v1526 = vunpack.c.l.s4 1983009808
    %v1527 = vunpack.c.0.s8 %v1526
    %v1528 = vperm.slane %v1520, %v1527
    %v1529 = vrot.slane %v1524, 4
    %v1530 = vsel %vm139, %v1529, %v1512
    %v1531 = vrot.slane %v1512, 4
    %v1532 = vsel %vm139, %v1524, %v1531
    %v1534 = vunpack.c.l.s4 1934713408
    %v1535 = vunpack.c.0.s8 %v1534
    %v1536 = vperm.slane %v1530, %v1535
    %v1538 = vunpack.c.l.s4 1934713408
    %v1539 = vunpack.c.0.s8 %v1538
    %v1540 = vperm.slane %v1532, %v1539
    %v1541 = vrot.slane %v1528, 4
    %v1542 = vsel %vm139, %v1541, %v1516
    %v1543 = vrot.slane %v1516, 4
    %v1544 = vsel %vm139, %v1528, %v1543
    %v1546 = vunpack.c.l.s4 1934713408
    %v1547 = vunpack.c.0.s8 %v1546
    %v1548 = vperm.slane %v1542, %v1547
    %v1550 = vunpack.c.l.s4 1934713408
    %v1551 = vunpack.c.0.s8 %v1550
    %v1552 = vperm.slane %v1544, %v1551
    %v1553 = vrot.slane %v1536, 4
    %v1554 = vsel %vm139, 0.0, %v1553
    %v1555 = vrot.slane %v1540, 4
    %v1556 = vsel %vm139, 0.0, %v1555
    %v1557 = vrot.slane %v1548, 4
    %v1558 = vsel %vm139, 0.0, %v1557
    %v1559 = vrot.slane %v1552, 4
    %v1560 = vsel %vm139, 0.0, %v1559
    %v1561 = vsel %vm139, %v1499, %v1480
    %v1563 = vunpack.c.l.s4 1983009808
    %v1564 = vunpack.c.0.s8 %v1563
    %v1565 = vperm.slane %v1561, %v1564
    %v1566 = vrot.slane %v1500, 4
    %v1567 = vsel %vm139, %v1566, %v1498
    %v1569 = vunpack.c.l.s4 1983009808
    %v1570 = vunpack.c.0.s8 %v1569
    %v1571 = vperm.slane %v1567, %v1570
    %v1572 = vsel %vm139, %v1503, %v1492
    %v1574 = vunpack.c.l.s4 1983009808
    %v1575 = vunpack.c.0.s8 %v1574
    %v1576 = vperm.slane %v1572, %v1575
    %v1577 = vrot.slane %v1504, 4
    %v1578 = vsel %vm139, %v1577, %v1502
    %v1580 = vunpack.c.l.s4 1983009808
    %v1581 = vunpack.c.0.s8 %v1580
    %v1582 = vperm.slane %v1578, %v1581
    %v1583 = vrot.slane %v1571, 4
    %v1584 = vsel %vm139, %v1583, %v1565
    %v1585 = vrot.slane %v1565, 4
    %v1586 = vsel %vm139, %v1571, %v1585
    %v1588 = vunpack.c.l.s4 1934713408
    %v1589 = vunpack.c.0.s8 %v1588
    %v1590 = vperm.slane %v1584, %v1589
    %v1592 = vunpack.c.l.s4 1934713408
    %v1593 = vunpack.c.0.s8 %v1592
    %v1594 = vperm.slane %v1586, %v1593
    %v1595 = vrot.slane %v1582, 4
    %v1596 = vsel %vm139, %v1595, %v1576
    %v1597 = vrot.slane %v1576, 4
    %v1598 = vsel %vm139, %v1582, %v1597
    %v1600 = vunpack.c.l.s4 1934713408
    %v1601 = vunpack.c.0.s8 %v1600
    %v1602 = vperm.slane %v1596, %v1601
    %v1604 = vunpack.c.l.s4 1934713408
    %v1605 = vunpack.c.0.s8 %v1604
    %v1606 = vperm.slane %v1598, %v1605
    %v1607 = vrot.slane %v1602, 4
    %v1608 = vsel %vm139, %v1607, %v1590
    %v1609 = vrot.slane %v1590, 4
    %v1610 = vsel %vm139, %v1602, %v1609
    %v1611 = vrot.slane %v1606, 4
    %v1612 = vsel %vm139, %v1611, %v1594
    %v1613 = vrot.slane %v1594, 4
    %v1614 = vsel %vm139, %v1606, %v1613
    %v1615 = vsel %vm139, %v1555, %v1536
    %v1617 = vunpack.c.l.s4 1983009808
    %v1618 = vunpack.c.0.s8 %v1617
    %v1619 = vperm.slane %v1615, %v1618
    %v1620 = vrot.slane %v1556, 4
    %v1621 = vsel %vm139, %v1620, %v1554
    %v1623 = vunpack.c.l.s4 1983009808
    %v1624 = vunpack.c.0.s8 %v1623
    %v1625 = vperm.slane %v1621, %v1624
    %v1626 = vsel %vm139, %v1559, %v1548
    %v1628 = vunpack.c.l.s4 1983009808
    %v1629 = vunpack.c.0.s8 %v1628
    %v1630 = vperm.slane %v1626, %v1629
    %v1631 = vrot.slane %v1560, 4
    %v1632 = vsel %vm139, %v1631, %v1558
    %v1634 = vunpack.c.l.s4 1983009808
    %v1635 = vunpack.c.0.s8 %v1634
    %v1636 = vperm.slane %v1632, %v1635
    %v1637 = vrot.slane %v1625, 4
    %v1638 = vsel %vm139, %v1637, %v1619
    %v1639 = vrot.slane %v1619, 4
    %v1640 = vsel %vm139, %v1625, %v1639
    %v1642 = vunpack.c.l.s4 1934713408
    %v1643 = vunpack.c.0.s8 %v1642
    %v1644 = vperm.slane %v1638, %v1643
    %v1646 = vunpack.c.l.s4 1934713408
    %v1647 = vunpack.c.0.s8 %v1646
    %v1648 = vperm.slane %v1640, %v1647
    %v1649 = vrot.slane %v1636, 4
    %v1650 = vsel %vm139, %v1649, %v1630
    %v1651 = vrot.slane %v1630, 4
    %v1652 = vsel %vm139, %v1636, %v1651
    %v1654 = vunpack.c.l.s4 1934713408
    %v1655 = vunpack.c.0.s8 %v1654
    %v1656 = vperm.slane %v1650, %v1655
    %v1658 = vunpack.c.l.s4 1934713408
    %v1659 = vunpack.c.0.s8 %v1658
    %v1660 = vperm.slane %v1652, %v1659
    %v1661 = vrot.slane %v1656, 4
    %v1662 = vsel %vm139, %v1661, %v1644
    %v1663 = vrot.slane %v1644, 4
    %v1664 = vsel %vm139, %v1656, %v1663
    %v1665 = vrot.slane %v1660, 4
    %v1666 = vsel %vm139, %v1665, %v1648
    %v1667 = vrot.slane %v1648, 4
    %v1668 = vsel %vm139, %v1660, %v1667
    %1671 = vrot.lane.b32.xlu0 %v1610, 8
    %v1672 = vpop.permute.xlu0 %1671
    %1673 = vrot.lane.b32.xlu0 %v1664, 8
    %v1674 = vpop.permute.xlu0 %1673
    %1679 = vrot.lane.b32.xlu0 %v1612, 16
    %v1680 = vpop.permute.xlu0 %1679
    %1681 = vrot.lane.b32.xlu0 %v1666, 16
    %v1682 = vpop.permute.xlu0 %1681
    %1687 = vrot.lane.b32.xlu0 %v1614, 24
    %v1688 = vpop.permute.xlu0 %1687
    %1689 = vrot.lane.b32.xlu0 %v1668, 24
    %v1690 = vpop.permute.xlu0 %1689
    %v1693 = vsel %vm847, %v1608, %v1672
    %v1694 = vsel %vm847, %v1662, %v1674
    %vm1695 = vcmask 130048
    %v1696 = vsel %vm1695, %v1693, %v1680
    %v1697 = vsel %vm1695, %v1694, %v1682
    %vm1698 = vcmask 195584
    %v1699 = vsel %vm1698, %v1696, %v1688
    %v1700 = vsel %vm1698, %v1697, %v1690
    %v1701 = vld [vmem:[#allocation7] sm:$0xff]
    %v1702 = vld [vmem:[#allocation7 + $0x8] sm:$0xff]
    %v1703 = vld [vmem:[#allocation7 + $0x10] sm:$0xff]
    %v1704 = vld [vmem:[#allocation7 + $0x18] sm:$0xff]
    %v1705 = vld [vmem:[%s3] sm:$0x1]
    %v1707 = vperm.slane %v1705, 0
    %v1710 = vsel %vm88, %v1699, 0
    %v1713 = vsel %vm88, %v1700, 0
    %1715 = vmatpush.msra.mxu0 0.0
    %1716 = vmatpush.msra.mxu0 0.0
    %1717 = vmatpush.msra.mxu0 0.0
    %1718 = vmatpush.msra.mxu0 0.0
    %1719 = vmatpush.msra.mxu0 0.0
    %1720 = vmatpush.msra.mxu0 0.0
    %1721 = vmatpush.msra.mxu0 0.0
    %1722 = vmatpush.msra.mxu0 0.0
    %1723 = vmatpush.msra.mxu0 0.0
    %1724 = vmatpush.msra.mxu0 0.0
    %1725 = vmatpush.msra.mxu0 0.0
    %1726 = vmatpush.msra.mxu0 0.0
    %1727 = vmatpush.msra.mxu0 %v1704
    %1728 = vmatpush.msra.mxu0 %v1703
    %1729 = vmatpush.msra.mxu0 %v1702
    %1730 = vmatpush.msra.mxu0 %v1701
    %1731 = vmatmul.f32.gmra.mxu0 %v1710
    %v1732 = vpop.f32.mrf.mxu0
    %v1733 = vadd.f32 %v1707, %v1732
    %1734 = vmatmul.f32.gmra.mxu0 %v1713
    %v1735 = vpop.f32.mrf.mxu0
    %v1736 = vadd.f32 %v1707, %v1735
    %1737 = vdwg.mxu0
    %1738 = vst.msk [vmem:[#allocation10] sm:$0xff] %vm88, %v1733
    %1739 = vst.msk [vmem:[#allocation10 + $0x8] sm:$0xff] %vm88, %v1736
    // Predicated region
    $region38: #{tpu_custom_call.1} parent=1 // pred_check
      _
    $region39: #{tpu_custom_call.1} parent=1 // pred_check_branch
      %1741 = sbr.rel (0) target = $region41
    $region40: #{tpu_custom_call.1} parent=1 // pred_region
      %1743 = vsyncadd [#allocation4], 0
      %s1744 = sshll.u32 [#allocation10], 4
      %s1745 = int_to_ptr.vmem [resolvable:$true] %s1744
      %s1746 = sshll.u32 %s5, 4
      %s1747 = int_to_ptr.hbm [resolvable:$true] %s1746
      %1752 = dma.vmem_to_hbm [thread:$0]  %s1745, 256, %s1747, [#allocation4], 128, 128, 8
    $region41: #{tpu_custom_call.1} parent=1 // pred_fallthru
      _
    // Predicated region
    $region42: #{tpu_custom_call.1} parent=1 // pred_check
      _
    $region43: #{tpu_custom_call.1} parent=1 // pred_check_branch
      %1754 = sbr.rel (0) target = $region45
    $region44: #{tpu_custom_call.1} parent=1 // pred_region
      %1756 = dma.done [#allocation4], 256
    $region45: #{tpu_custom_call.1} parent=1 // pred_fallthru
      _
    %1757 = vsyncpa [#allocation3], 1
    %1758 = vsyncpa [#allocation6], 1
    %1759 = vsyncpa [#allocation9], 1
    %1760 = vsyncpa [#allocation4], 1

</llo_original>
